<compile_context>
chip_gen: v7x
topology: tpu7x:2x2x1
jax: 0.10.0
libtpu: 0.0.40
codegen_flags: <defaults>
</compile_context>

<pallas_src>
import functools

import jax
import jax.numpy as jnp
from jax.experimental import pallas as pl
from jax.experimental.pallas import tpu as pltpu


# ----------------------------------------------------------------------------
# Fused Pallas kernel: all three branches of Layer3 for one batch image.
#   relu(bn1_b(x)) -> conv(1xK_b along W) -> relu(bn2_b(.)) -> conv(K_bx1
#   along H) -> + scale * x,  for b = 0, 1, 2, written as one output slab.
# ----------------------------------------------------------------------------
def _layer3_kernel(x_ref, s1_ref, b1_ref, s2_ref, b2_ref, w1_ref, w2_ref,
                   o_ref, *, KMAX, H, W, CC, scale):
    PW = 8                          # zero halo width (sublane-tile aligned)
    base = PW - (KMAX - 1) // 2     # window start of the first (global) tap

    x = x_ref[0].astype(jnp.float32)                              # (H, W, CC)

    # --- BN1 + ReLU, all branches at once (128-lane dense VPU ops) ----------
    a = jnp.maximum(x * s1_ref[...].reshape(1, 1, CC)
                    + b1_ref[...].reshape(1, 1, CC), 0.0)

    # --- conv stage 1: (1, K) along W  ->  single im2col matmul -------------
    zw = jnp.zeros((H, PW, CC), jnp.float32)
    ap = jnp.concatenate([zw, a, zw], axis=1)                     # (H, W+2*PW, CC)
    cols = [ap[:, base + t: base + t + W, :] for t in range(KMAX)]
    A = jnp.concatenate(cols, axis=-1).reshape(H * W, KMAX * CC)  # (H*W, 7*128)
    y = jnp.dot(A.astype(jnp.bfloat16), w1_ref[...],
                preferred_element_type=jnp.float32)               # (H*W, CC)

    # --- BN2 + ReLU ----------------------------------------------------------
    bm = jnp.maximum(y * s2_ref[...] + b2_ref[...], 0.0).reshape(H, W, CC)

    # --- conv stage 2: (K, 1) along H  ->  single im2col matmul -------------
    zh = jnp.zeros((PW, W, CC), jnp.float32)
    bp = jnp.concatenate([zh, bm, zh], axis=0)                    # (H+2*PW, W, CC)
    rows = [bp[base + t: base + t + H, :, :] for t in range(KMAX)]
    B = jnp.concatenate(rows, axis=-1).reshape(H * W, KMAX * CC)
    z = jnp.dot(B.astype(jnp.bfloat16), w2_ref[...],
                preferred_element_type=jnp.float32)               # (H*W, CC)

    # --- residual add (f32) ---------------------------------------------------
    res = x.reshape(H * W, CC)
    out = z + res if scale == 1.0 else z + scale * res
    o_ref[0] = out.astype(o_ref.dtype)


def layer3_pallas(x_pad_nhwc, s1, b1, s2, b2, w1, w2, *, scale):
    N, H, W, CC = x_pad_nhwc.shape
    KMAX = w1.shape[0] // CC
    kern = functools.partial(_layer3_kernel, KMAX=KMAX, H=H, W=W, CC=CC,
                             scale=scale)
    return pl.pallas_call(
        kern,
        out_shape=jax.ShapeDtypeStruct((N, H * W, CC), jnp.float32),
        grid=(N,),
        in_specs=[
            pl.BlockSpec((1, H, W, CC), lambda n: (n, 0, 0, 0)),
            pl.BlockSpec((1, CC), lambda n: (0, 0)),
            pl.BlockSpec((1, CC), lambda n: (0, 0)),
            pl.BlockSpec((1, CC), lambda n: (0, 0)),
            pl.BlockSpec((1, CC), lambda n: (0, 0)),
            pl.BlockSpec((KMAX * CC, CC), lambda n: (0, 0)),
            pl.BlockSpec((KMAX * CC, CC), lambda n: (0, 0)),
        ],
        out_specs=pl.BlockSpec((1, H * W, CC), lambda n: (n, 0, 0)),
        compiler_params=pltpu.CompilerParams(
            dimension_semantics=("parallel",)),
    )(x_pad_nhwc, s1, b1, s2, b2, w1, w2)


# ----------------------------------------------------------------------------
# Parameter setup (deterministic, synthetic) and host-side folding / packing
# ----------------------------------------------------------------------------
def make_bnactconv_params(key, c_in, c_out, kh, kw):
    k1, k2, k3, k4, k5 = jax.random.split(key, 5)
    gamma = 1.0 + 0.1 * jax.random.normal(k1, (c_in,), jnp.float32)
    beta = 0.1 * jax.random.normal(k2, (c_in,), jnp.float32)
    mean = 0.1 * jax.random.normal(k3, (c_in,), jnp.float32)
    var = 1.0 + 0.1 * jax.random.uniform(k4, (c_in,), jnp.float32)
    fan_in = c_in * kh * kw
    w = jax.random.normal(k5, (c_out, c_in, kh, kw), jnp.float32) * (2.0 / fan_in) ** 0.5
    return dict(gamma=gamma, beta=beta, mean=mean, var=var, w=w)


def fold_bn(p, eps=1e-5):
    s = p["gamma"] / jnp.sqrt(p["var"] + eps)
    b = p["beta"] - p["mean"] * s
    return s, b


def prep_layer3_params(raw_params, Ks, C):
    """Fold BN and pack all branches into one lane-padded parameter set.

    Returns (s1, b1, s2, b2, w1_bd, w2_bd) where the channel axis is
    [br1 ch | br2 ch | br3 ch | zero pad] = 3*C -> CC (multiple of 128) and
    w*_bd are block-diagonal bf16 im2col weights of shape (KMAX*CC, CC).
    """
    NB = len(Ks)
    KMAX = max(Ks)
    PADMAX = (KMAX - 1) // 2
    c_out = NB * C
    CC = -(-c_out // 128) * 128

    s1 = jnp.zeros((CC,), jnp.float32)
    b1 = jnp.zeros((CC,), jnp.float32)
    s2 = jnp.zeros((CC,), jnp.float32)
    b2 = jnp.zeros((CC,), jnp.float32)
    w1 = jnp.zeros((KMAX * CC, CC), jnp.float32)
    w2 = jnp.zeros((KMAX * CC, CC), jnp.float32)

    for bidx, ((p1, p2), K) in enumerate(zip(raw_params, Ks)):
        pad = (K - 1) // 2
        toff = PADMAX - pad                    # align taps to the KMAX grid
        lo = bidx * C
        sa, ba = fold_bn(p1)
        sb, bb = fold_bn(p2)
        s1 = s1.at[lo:lo + C].set(sa)
        b1 = b1.at[lo:lo + C].set(ba)
        s2 = s2.at[lo:lo + C].set(sb)
        b2 = b2.at[lo:lo + C].set(bb)
        # p1['w']: (Cout, Cin, 1, K) -> taps (K, Cin, Cout)
        # p2['w']: (Cout, Cin, K, 1) -> taps (K, Cin, Cout)
        w1_taps = jnp.transpose(p1["w"][:, :, 0, :], (2, 1, 0))
        w2_taps = jnp.transpose(p2["w"][:, :, :, 0], (2, 1, 0))
        for tb in range(K):
            t = tb + toff
            r = t * CC + lo
            w1 = w1.at[r:r + C, lo:lo + C].set(w1_taps[tb])
            w2 = w2.at[r:r + C, lo:lo + C].set(w2_taps[tb])

    return (s1.reshape(1, CC), b1.reshape(1, CC),
            s2.reshape(1, CC), b2.reshape(1, CC),
            w1.astype(jnp.bfloat16), w2.astype(jnp.bfloat16))


def layer3_forward(x_nchw, params, *, Ks, scale=1.0):
    """Equivalent of Layer3.forward: (N, 32, H, W) -> (N, 96, H*W)."""
    s1, b1, s2, b2, w1, w2 = params
    N, C, H, W = x_nchw.shape
    c_out = len(Ks) * C
    CC = s1.shape[1]

    x_nhwc = jnp.transpose(x_nchw, (0, 2, 3, 1))
    reps = [x_nhwc] * len(Ks)
    pad_c = CC - c_out
    if pad_c:
        reps.append(jnp.zeros((N, H, W, pad_c), x_nhwc.dtype))
    x_pad = jnp.concatenate(reps, axis=-1)                  # (N, H, W, CC)

    out = layer3_pallas(x_pad, s1, b1, s2, b2, w1, w2, scale=scale)
    out = out[:, :, :c_out]                                 # (N, H*W, 96)
    return jnp.transpose(out, (0, 2, 1))                    # (N, 96, H*W)


# ----------------------------------------------------------------------------
# Pure-JAX reference (for correctness check)
# ----------------------------------------------------------------------------
def ref_branch(x_nhwc, p1, p2, K, scale):
    eps = 1e-5
    pad = (K - 1) // 2

    def bn_act(x, p):
        return jnp.maximum(
            (x - p["mean"]) / jnp.sqrt(p["var"] + eps) * p["gamma"] + p["beta"], 0.0)

    a = bn_act(x_nhwc, p1)
    w1 = jnp.transpose(p1["w"], (2, 3, 1, 0))  # OIHW -> HWIO
    y = jax.lax.conv_general_dilated(
        a, w1, (1, 1), ((0, 0), (pad, pad)),
        dimension_numbers=("NHWC", "HWIO", "NHWC"),
        precision=jax.lax.Precision.HIGHEST)
    b = bn_act(y, p2)
    w2 = jnp.transpose(p2["w"], (2, 3, 1, 0))
    z = jax.lax.conv_general_dilated(
        b, w2, (1, 1), ((pad, pad), (0, 0)),
        dimension_numbers=("NHWC", "HWIO", "NHWC"),
        precision=jax.lax.Precision.HIGHEST)
    return z + scale * x_nhwc


# TODO(synk): only Layer3 of Ablation is implemented; Layer1/2/4/5, the SE
# blocks and the classifier depend on BNActConv/SEBasicBlock/config
# definitions that are not provided in the spec.
# TODO(synk): BatchNorm training-mode (batch statistics) is not reproduced;
# BN is folded using running stats (eval semantics), activation assumed ReLU.

if __name__ == "__main__":
    key = jax.random.PRNGKey(0)
    kx, *bkeys = jax.random.split(key, 7)

    N, C, H, W = 2, 32, 8, 8          # channels fixed to 32 by the module
    SCALE = 1.0
    x_nchw = jax.random.normal(kx, (N, C, H, W), jnp.float32)

    Ks = (7, 5, 3)
    raw_params = []
    for i, K in enumerate(Ks):
        p1 = make_bnactconv_params(bkeys[2 * i], C, C, 1, K)      # (1,K) conv
        p2 = make_bnactconv_params(bkeys[2 * i + 1], C, C, K, 1)  # (K,1) conv
        raw_params.append((p1, p2))

    prepped = prep_layer3_params(raw_params, Ks, C)

    fwd = jax.jit(functools.partial(layer3_forward, Ks=Ks, scale=SCALE))
    out = jax.block_until_ready(fwd(x_nchw, prepped))

    # reference
    x_nhwc = jnp.transpose(x_nchw, (0, 2, 3, 1))
    ref_list = []
    for (p1, p2), K in zip(raw_params, Ks):
        r = ref_branch(x_nhwc, p1, p2, K, SCALE)
        ref_list.append(jnp.transpose(r, (0, 3, 1, 2)))
    ref = jnp.concatenate(ref_list, axis=1).reshape(N, 3 * C, H * W)

    assert out.shape == (N, 3 * C, H * W), out.shape
    err = float(jnp.max(jnp.abs(out - ref)))
    assert err < 5e-2, f"max abs err {err}"
    print("KERNEL_OK")
</pallas_src>

<mosaic_0001>
module attributes {stable_mosaic.version = 11 : i64} {
  func.func @_layer3_kernel(%arg0: i32, %arg1: memref<1x8x8x128xf32, #tpu.memory_space<vmem>>, %arg2: memref<1x128xf32, #tpu.memory_space<vmem>>, %arg3: memref<1x128xf32, #tpu.memory_space<vmem>>, %arg4: memref<1x128xf32, #tpu.memory_space<vmem>>, %arg5: memref<1x128xf32, #tpu.memory_space<vmem>>, %arg6: memref<896x128xbf16, #tpu.memory_space<vmem>>, %arg7: memref<896x128xbf16, #tpu.memory_space<vmem>>, %arg8: memref<1x64x128xf32, #tpu.memory_space<vmem>>) attributes {dimension_semantics = [#tpu.dimension_semantics<parallel>], iteration_bounds = array<i64: 2>, scalar_prefetch = 0 : i64, scratch_operands = 0 : i64, tpu.core_type = #tpu.core_type<tc>, window_params = [{transform_indices = @transform_0, window_bounds = array<i64: 1, 8, 8, 128>}, {pipeline_mode = #tpu.pipeline_mode<synchronous>, transform_indices = @transform_1, window_bounds = array<i64: 1, 128>}, {pipeline_mode = #tpu.pipeline_mode<synchronous>, transform_indices = @transform_2, window_bounds = array<i64: 1, 128>}, {pipeline_mode = #tpu.pipeline_mode<synchronous>, transform_indices = @transform_3, window_bounds = array<i64: 1, 128>}, {pipeline_mode = #tpu.pipeline_mode<synchronous>, transform_indices = @transform_4, window_bounds = array<i64: 1, 128>}, {pipeline_mode = #tpu.pipeline_mode<synchronous>, transform_indices = @transform_5, window_bounds = array<i64: 896, 128>}, {pipeline_mode = #tpu.pipeline_mode<synchronous>, transform_indices = @transform_6, window_bounds = array<i64: 896, 128>}, {transform_indices = @transform_7, window_bounds = array<i64: 1, 64, 128>}]} {
    %c0 = arith.constant 0 : index
    %c0_0 = arith.constant 0 : index
    %c0_1 = arith.constant 0 : index
    %c0_2 = arith.constant 0 : index
    %0 = vector.load %arg1[%c0, %c0_0, %c0_1, %c0_2] : memref<1x8x8x128xf32, #tpu.memory_space<vmem>>, vector<1x8x8x128xf32>
    %1 = vector.shape_cast %0 : vector<1x8x8x128xf32> to vector<8x8x128xf32>
    %c0_3 = arith.constant 0 : index
    %c0_4 = arith.constant 0 : index
    %2 = vector.load %arg2[%c0_3, %c0_4] : memref<1x128xf32, #tpu.memory_space<vmem>>, vector<1x128xf32>
    %3 = vector.shape_cast %2 : vector<1x128xf32> to vector<1x1x128xf32>
    %4 = vector.broadcast %3 : vector<1x1x128xf32> to vector<8x8x128xf32>
    %5 = arith.mulf %1, %4 : vector<8x8x128xf32>
    %c0_5 = arith.constant 0 : index
    %c0_6 = arith.constant 0 : index
    %6 = vector.load %arg3[%c0_5, %c0_6] : memref<1x128xf32, #tpu.memory_space<vmem>>, vector<1x128xf32>
    %7 = vector.shape_cast %6 : vector<1x128xf32> to vector<1x1x128xf32>
    %8 = vector.broadcast %7 : vector<1x1x128xf32> to vector<8x8x128xf32>
    %9 = arith.addf %5, %8 : vector<8x8x128xf32>
    %cst = arith.constant 0.000000e+00 : f32
    %10 = vector.broadcast %cst : f32 to vector<8x8x128xf32>
    %11 = arith.maximumf %9, %10 : vector<8x8x128xf32>
    %cst_7 = arith.constant 0.000000e+00 : f32
    %12 = vector.broadcast %cst_7 : f32 to vector<8x8x128xf32>
    %13 = tpu.concatenate %12, %11, %12 in 1 : vector<8x8x128xf32>, vector<8x8x128xf32>, vector<8x8x128xf32> -> vector<8x24x128xf32>
    %14 = vector.extract_strided_slice %13 {offsets = [0, 5, 0], sizes = [8, 8, 128], strides = [1, 1, 1]} : vector<8x24x128xf32> to vector<8x8x128xf32>
    %15 = vector.extract_strided_slice %13 {offsets = [0, 6, 0], sizes = [8, 8, 128], strides = [1, 1, 1]} : vector<8x24x128xf32> to vector<8x8x128xf32>
    %16 = vector.extract_strided_slice %13 {offsets = [0, 7, 0], sizes = [8, 8, 128], strides = [1, 1, 1]} : vector<8x24x128xf32> to vector<8x8x128xf32>
    %17 = vector.extract_strided_slice %13 {offsets = [0, 8, 0], sizes = [8, 8, 128], strides = [1, 1, 1]} : vector<8x24x128xf32> to vector<8x8x128xf32>
    %18 = vector.extract_strided_slice %13 {offsets = [0, 9, 0], sizes = [8, 8, 128], strides = [1, 1, 1]} : vector<8x24x128xf32> to vector<8x8x128xf32>
    %19 = vector.extract_strided_slice %13 {offsets = [0, 10, 0], sizes = [8, 8, 128], strides = [1, 1, 1]} : vector<8x24x128xf32> to vector<8x8x128xf32>
    %20 = vector.extract_strided_slice %13 {offsets = [0, 11, 0], sizes = [8, 8, 128], strides = [1, 1, 1]} : vector<8x24x128xf32> to vector<8x8x128xf32>
    %21 = tpu.concatenate %14, %15, %16, %17, %18, %19, %20 in 2 : vector<8x8x128xf32>, vector<8x8x128xf32>, vector<8x8x128xf32>, vector<8x8x128xf32>, vector<8x8x128xf32>, vector<8x8x128xf32>, vector<8x8x128xf32> -> vector<8x8x896xf32>
    %22 = vector.shape_cast %21 : vector<8x8x896xf32> to vector<64x896xf32>
    %23 = arith.truncf %22 : vector<64x896xf32> to vector<64x896xbf16>
    %c0_8 = arith.constant 0 : index
    %c0_9 = arith.constant 0 : index
    %24 = vector.load %arg6[%c0_8, %c0_9] : memref<896x128xbf16, #tpu.memory_space<vmem>>, vector<896x128xbf16>
    %cst_10 = arith.constant dense<0.000000e+00> : vector<64x128xf32>
    %25 = tpu.matmul %23, %24, %cst_10 {dimension_numbers = #tpu.dot_dimension_numbers<[1], [0], [0], [1], [0, 0, 1, 1], [], []>} : vector<64x896xbf16>, vector<896x128xbf16>, vector<64x128xf32> -> vector<64x128xf32>
    %c0_11 = arith.constant 0 : index
    %c0_12 = arith.constant 0 : index
    %26 = vector.load %arg4[%c0_11, %c0_12] : memref<1x128xf32, #tpu.memory_space<vmem>>, vector<1x128xf32>
    %27 = vector.broadcast %26 : vector<1x128xf32> to vector<64x128xf32>
    %28 = arith.mulf %25, %27 : vector<64x128xf32>
    %c0_13 = arith.constant 0 : index
    %c0_14 = arith.constant 0 : index
    %29 = vector.load %arg5[%c0_13, %c0_14] : memref<1x128xf32, #tpu.memory_space<vmem>>, vector<1x128xf32>
    %30 = vector.broadcast %29 : vector<1x128xf32> to vector<64x128xf32>
    %31 = arith.addf %28, %30 : vector<64x128xf32>
    %cst_15 = arith.constant 0.000000e+00 : f32
    %32 = vector.broadcast %cst_15 : f32 to vector<64x128xf32>
    %33 = arith.maximumf %31, %32 : vector<64x128xf32>
    %34 = vector.shape_cast %33 : vector<64x128xf32> to vector<8x8x128xf32>
    %cst_16 = arith.constant 0.000000e+00 : f32
    %35 = vector.broadcast %cst_16 : f32 to vector<8x8x128xf32>
    %36 = tpu.concatenate %35, %34, %35 in 0 : vector<8x8x128xf32>, vector<8x8x128xf32>, vector<8x8x128xf32> -> vector<24x8x128xf32>
    %37 = vector.extract_strided_slice %36 {offsets = [5, 0, 0], sizes = [8, 8, 128], strides = [1, 1, 1]} : vector<24x8x128xf32> to vector<8x8x128xf32>
    %38 = vector.extract_strided_slice %36 {offsets = [6, 0, 0], sizes = [8, 8, 128], strides = [1, 1, 1]} : vector<24x8x128xf32> to vector<8x8x128xf32>
    %39 = vector.extract_strided_slice %36 {offsets = [7, 0, 0], sizes = [8, 8, 128], strides = [1, 1, 1]} : vector<24x8x128xf32> to vector<8x8x128xf32>
    %40 = vector.extract_strided_slice %36 {offsets = [8, 0, 0], sizes = [8, 8, 128], strides = [1, 1, 1]} : vector<24x8x128xf32> to vector<8x8x128xf32>
    %41 = vector.extract_strided_slice %36 {offsets = [9, 0, 0], sizes = [8, 8, 128], strides = [1, 1, 1]} : vector<24x8x128xf32> to vector<8x8x128xf32>
    %42 = vector.extract_strided_slice %36 {offsets = [10, 0, 0], sizes = [8, 8, 128], strides = [1, 1, 1]} : vector<24x8x128xf32> to vector<8x8x128xf32>
    %43 = vector.extract_strided_slice %36 {offsets = [11, 0, 0], sizes = [8, 8, 128], strides = [1, 1, 1]} : vector<24x8x128xf32> to vector<8x8x128xf32>
    %44 = tpu.concatenate %37, %38, %39, %40, %41, %42, %43 in 2 : vector<8x8x128xf32>, vector<8x8x128xf32>, vector<8x8x128xf32>, vector<8x8x128xf32>, vector<8x8x128xf32>, vector<8x8x128xf32>, vector<8x8x128xf32> -> vector<8x8x896xf32>
    %45 = vector.shape_cast %44 : vector<8x8x896xf32> to vector<64x896xf32>
    %46 = arith.truncf %45 : vector<64x896xf32> to vector<64x896xbf16>
    %c0_17 = arith.constant 0 : index
    %c0_18 = arith.constant 0 : index
    %47 = vector.load %arg7[%c0_17, %c0_18] : memref<896x128xbf16, #tpu.memory_space<vmem>>, vector<896x128xbf16>
    %cst_19 = arith.constant dense<0.000000e+00> : vector<64x128xf32>
    %48 = tpu.matmul %46, %47, %cst_19 {dimension_numbers = #tpu.dot_dimension_numbers<[1], [0], [0], [1], [0, 0, 1, 1], [], []>} : vector<64x896xbf16>, vector<896x128xbf16>, vector<64x128xf32> -> vector<64x128xf32>
    %49 = vector.shape_cast %1 : vector<8x8x128xf32> to vector<64x128xf32>
    %50 = arith.addf %48, %49 : vector<64x128xf32>
    %c0_20 = arith.constant 0 : index
    %c0_21 = arith.constant 0 : index
    %c0_22 = arith.constant 0 : index
    %51 = vector.load %arg8[%c0_20, %c0_21, %c0_22] : memref<1x64x128xf32, #tpu.memory_space<vmem>>, vector<1x64x128xf32>
    %52 = vector.shape_cast %51 : vector<1x64x128xf32> to vector<64x128xf32>
    %53 = vector.shape_cast %50 : vector<64x128xf32> to vector<1x64x128xf32>
    tpu.vector_store %arg8[%c0_20, %c0_21, %c0_22], %53 {strides = array<i32>} : memref<1x64x128xf32, #tpu.memory_space<vmem>>, vector<1x64x128xf32>,
    return
  }
  func.func @transform_0(%arg0: i32) -> (i32, i32, i32, i32) {
    %c0_i32 = arith.constant 0 : i32
    %c0_i32_0 = arith.constant 0 : i32
    %c0_i32_1 = arith.constant 0 : i32
    %c0_i32_2 = arith.constant 0 : i32
    return %arg0, %c0_i32, %c0_i32_0, %c0_i32_1 : i32, i32, i32, i32
  }
  func.func @transform_1(%arg0: i32) -> (i32, i32) {
    %c0_i32 = arith.constant 0 : i32
    %c0_i32_0 = arith.constant 0 : i32
    %c0_i32_1 = arith.constant 0 : i32
    return %c0_i32, %c0_i32_0 : i32, i32
  }
  func.func @transform_2(%arg0: i32) -> (i32, i32) {
    %c0_i32 = arith.constant 0 : i32
    %c0_i32_0 = arith.constant 0 : i32
    %c0_i32_1 = arith.constant 0 : i32
    return %c0_i32, %c0_i32_0 : i32, i32
  }
  func.func @transform_3(%arg0: i32) -> (i32, i32) {
    %c0_i32 = arith.constant 0 : i32
    %c0_i32_0 = arith.constant 0 : i32
    %c0_i32_1 = arith.constant 0 : i32
    return %c0_i32, %c0_i32_0 : i32, i32
  }
  func.func @transform_4(%arg0: i32) -> (i32, i32) {
    %c0_i32 = arith.constant 0 : i32
    %c0_i32_0 = arith.constant 0 : i32
    %c0_i32_1 = arith.constant 0 : i32
    return %c0_i32, %c0_i32_0 : i32, i32
  }
  func.func @transform_5(%arg0: i32) -> (i32, i32) {
    %c0_i32 = arith.constant 0 : i32
    %c0_i32_0 = arith.constant 0 : i32
    %c0_i32_1 = arith.constant 0 : i32
    return %c0_i32, %c0_i32_0 : i32, i32
  }
  func.func @transform_6(%arg0: i32) -> (i32, i32) {
    %c0_i32 = arith.constant 0 : i32
    %c0_i32_0 = arith.constant 0 : i32
    %c0_i32_1 = arith.constant 0 : i32
    return %c0_i32, %c0_i32_0 : i32, i32
  }
  func.func @transform_7(%arg0: i32) -> (i32, i32, i32) {
    %c0_i32 = arith.constant 0 : i32
    %c0_i32_0 = arith.constant 0 : i32
    %c0_i32_1 = arith.constant 0 : i32
    return %arg0, %c0_i32, %c0_i32_0 : i32, i32, i32
  }
}

</mosaic_0001>

<llo_original>
// kernel: layer3_forward.1
$region0: #{layer3_forward.1}
  #allocation0 [shape = 'u32[]', space=smem, size = 0x4, offset = 0x4, fixed_abs, tag = 'smem constant byte address 0x4 - core index']
  #allocation1 [shape = 'u32[144,128]{1,0:T(1,128)}', space=vmem, size = 0x12000, scoped, tag = 'internal scratch']
  %s0 = inlined_call_operand.vmem [shape: f32[2,8,8,128], index: 0, kind: input, shape index: {}]
  %s1 = inlined_call_operand.vmem [shape: f32[1,128], index: 1, kind: input, shape index: {}]
  %s2 = inlined_call_operand.vmem [shape: f32[1,128], index: 2, kind: input, shape index: {}]
  %s3 = inlined_call_operand.vmem [shape: f32[1,128], index: 3, kind: input, shape index: {}]
  %s4 = inlined_call_operand.vmem [shape: f32[1,128], index: 4, kind: input, shape index: {}]
  %s5 = inlined_call_operand.hbm [shape: bf16[896,128], index: 5, kind: input, shape index: {}]
  %s6 = inlined_call_operand.hbm [shape: bf16[896,128], index: 6, kind: input, shape index: {}]
  %s7 = inlined_call_operand.vmem [shape: f32[2,64,128], index: 7, kind: output, shape index: {}]
  %s8 = sld [smem:[#allocation0]]
  $region69: #{layer3_forward.1} parent=0
    _
  %s10 = ssub.s32 1, %s8
  %s11 = scalar_select 0, %s10, %s8
  $region1: #{layer3_forward.1} parent=0
    #allocation2 [shape = 'u8[229376]{0}', space=vmem, size = 0x38000, scoped, tag = 'input window, operand 5, single buffered']
    #allocation3 [shape = 's32[2]{0}', space=sflag, size = 0x8, scoped, tag = 'scoped memory for layer3_forward.1']
    #allocation4 [shape = 'u8[229376]{0}', space=vmem, size = 0x38000, scoped, tag = 'input window, operand 6, single buffered']
    #allocation5 [shape = 's32[1]{0}', space=sflag, size = 0x4, scoped, tag = 'scoped memory for layer3_forward.1']
    %12 = vsyncpa [#allocation3], 0
    %13 = vsyncpa [#allocation5], 0
    loop: start=0, step=1, limit=4
    $region2: #{layer3_forward.1} parent=1 // loop_pre_header
      _
    $region3: #{layer3_forward.1} parent=1 // loop_header
      %s15 = sphi 0, %s19
      %p16 = scmp.ge.s32.totalorder %s15, 4
      %s25 = sphi 0, %s27
      %s28 = sphi 0, %s25
      %s29 = sphi 0, %s28
      %s45 = sphi 0, %s29
      %s49 = sphi 0, %s49
      %s51 = sphi 0, %s49
      %s52 = sphi 0, %s51
      %s66 = sphi 0, %s52
      %s70 = sphi 0, %s70
      %s72 = sphi 0, %s70
      %s73 = sphi 0, %s72
      %s87 = sphi 0, %s73
      %s91 = sphi 0, %s91
      %s93 = sphi 0, %s91
      %s94 = sphi 0, %s93
      %s108 = sphi 0, %s94
      %s112 = sphi 0, %s112
      %s114 = sphi 0, %s112
      %s115 = sphi 0, %s114
      %s129 = sphi 0, %s115
      %s133 = sphi 0, %s133
      %s135 = sphi 0, %s133
      %s136 = sphi 0, %s135
      %s150 = sphi 0, %s136
      %s154 = sphi 0, %s154
      %s156 = sphi 0, %s154
      %s157 = sphi 0, %s156
      %s171 = sphi 0, %s157
      %s177 = sphi 0, %s179
      %s180 = sphi 0, %s177
      %s181 = sphi 0, %s180
      %s197 = sphi 0, %s181
    $region4: #{layer3_forward.1} parent=1 // loop_header_branch
      %18 = sbr.rel (%p16) target = $region8
    $region5: #{layer3_forward.1} parent=1 // loop_body
      %s20 = ssub.s32 %s15, 1
      %s21 = ssub.s32 %s15, 2
      %s22 = sadd.s32 %s15, 1
      %s23 = ssub.s32 %s15, %s22
      %p24 = scmp.eq.s32.totalorder %s23, 0
      %s26 = sadd.s32 %s25, 1
      %s27 = scalar_select %p24, %s25, %s26
      %p30 = pneg %p24
      %p31 = scmp.eq.s32.totalorder %s15, 1
      %p32 = por %p30, %p31
      %p33 = scmp.ne.s32.totalorder %s25, %s28
      %p34 = scmp.eq.s32.totalorder %s15, 0
      %p35 = por %p33, %p34
      %p36 = scmp.ne.s32.totalorder %s25, %s28
      %p37 = scmp.eq.s32.totalorder %s20, 1
      %p38 = por %p36, %p37
      %p39 = scmp.ne.s32.totalorder %s28, %s29
      %p40 = scmp.eq.s32.totalorder %s20, 0
      %p41 = por %p39, %p40
      %p42 = scmp.ne.s32.totalorder %s28, %s29
      %p43 = scmp.eq.s32.totalorder %s21, 1
      %p44 = por %p42, %p43
      %p46 = scmp.ne.s32.totalorder %s29, %s45
      %p47 = scmp.eq.s32.totalorder %s21, 0
      %p48 = por %p46, %p47
      %s50 = sadd.s32 %s49, 1
      %p53 = scmp.eq.s32.totalorder %s15, 1
      %p54 = scmp.ne.s32.totalorder %s49, %s51
      %p55 = scmp.eq.s32.totalorder %s15, 0
      %p56 = por %p54, %p55
      %p57 = scmp.ne.s32.totalorder %s49, %s51
      %p58 = scmp.eq.s32.totalorder %s20, 1
      %p59 = por %p57, %p58
      %p60 = scmp.ne.s32.totalorder %s51, %s52
      %p61 = scmp.eq.s32.totalorder %s20, 0
      %p62 = por %p60, %p61
      %p63 = scmp.ne.s32.totalorder %s51, %s52
      %p64 = scmp.eq.s32.totalorder %s21, 1
      %p65 = por %p63, %p64
      %p67 = scmp.ne.s32.totalorder %s52, %s66
      %p68 = scmp.eq.s32.totalorder %s21, 0
      %p69 = por %p67, %p68
      %s71 = sadd.s32 %s70, 1
      %p74 = scmp.eq.s32.totalorder %s15, 1
      %p75 = scmp.ne.s32.totalorder %s70, %s72
      %p76 = scmp.eq.s32.totalorder %s15, 0
      %p77 = por %p75, %p76
      %p78 = scmp.ne.s32.totalorder %s70, %s72
      %p79 = scmp.eq.s32.totalorder %s20, 1
      %p80 = por %p78, %p79
      %p81 = scmp.ne.s32.totalorder %s72, %s73
      %p82 = scmp.eq.s32.totalorder %s20, 0
      %p83 = por %p81, %p82
      %p84 = scmp.ne.s32.totalorder %s72, %s73
      %p85 = scmp.eq.s32.totalorder %s21, 1
      %p86 = por %p84, %p85
      %p88 = scmp.ne.s32.totalorder %s73, %s87
      %p89 = scmp.eq.s32.totalorder %s21, 0
      %p90 = por %p88, %p89
      %s92 = sadd.s32 %s91, 1
      %p95 = scmp.eq.s32.totalorder %s15, 1
      %p96 = scmp.ne.s32.totalorder %s91, %s93
      %p97 = scmp.eq.s32.totalorder %s15, 0
      %p98 = por %p96, %p97
      %p99 = scmp.ne.s32.totalorder %s91, %s93
      %p100 = scmp.eq.s32.totalorder %s20, 1
      %p101 = por %p99, %p100
      %p102 = scmp.ne.s32.totalorder %s93, %s94
      %p103 = scmp.eq.s32.totalorder %s20, 0
      %p104 = por %p102, %p103
      %p105 = scmp.ne.s32.totalorder %s93, %s94
      %p106 = scmp.eq.s32.totalorder %s21, 1
      %p107 = por %p105, %p106
      %p109 = scmp.ne.s32.totalorder %s94, %s108
      %p110 = scmp.eq.s32.totalorder %s21, 0
      %p111 = por %p109, %p110
      %s113 = sadd.s32 %s112, 1
      %p116 = scmp.eq.s32.totalorder %s15, 1
      %p117 = scmp.ne.s32.totalorder %s112, %s114
      %p118 = scmp.eq.s32.totalorder %s15, 0
      %p119 = por %p117, %p118
      %p120 = scmp.ne.s32.totalorder %s112, %s114
      %p121 = scmp.eq.s32.totalorder %s20, 1
      %p122 = por %p120, %p121
      %p123 = scmp.ne.s32.totalorder %s114, %s115
      %p124 = scmp.eq.s32.totalorder %s20, 0
      %p125 = por %p123, %p124
      %p126 = scmp.ne.s32.totalorder %s114, %s115
      %p127 = scmp.eq.s32.totalorder %s21, 1
      %p128 = por %p126, %p127
      %p130 = scmp.ne.s32.totalorder %s115, %s129
      %p131 = scmp.eq.s32.totalorder %s21, 0
      %p132 = por %p130, %p131
      %s134 = sadd.s32 %s133, 1
      %p137 = scmp.eq.s32.totalorder %s15, 1
      %p138 = scmp.ne.s32.totalorder %s133, %s135
      %p139 = scmp.eq.s32.totalorder %s15, 0
      %p140 = por %p138, %p139
      %p141 = scmp.ne.s32.totalorder %s133, %s135
      %p142 = scmp.eq.s32.totalorder %s20, 1
      %p143 = por %p141, %p142
      %p144 = scmp.ne.s32.totalorder %s135, %s136
      %p145 = scmp.eq.s32.totalorder %s20, 0
      %p146 = por %p144, %p145
      %p147 = scmp.ne.s32.totalorder %s135, %s136
      %p148 = scmp.eq.s32.totalorder %s21, 1
      %p149 = por %p147, %p148
      %p151 = scmp.ne.s32.totalorder %s136, %s150
      %p152 = scmp.eq.s32.totalorder %s21, 0
      %p153 = por %p151, %p152
      %s155 = sadd.s32 %s154, 1
      %p158 = scmp.eq.s32.totalorder %s15, 1
      %p159 = scmp.ne.s32.totalorder %s154, %s156
      %p160 = scmp.eq.s32.totalorder %s15, 0
      %p161 = por %p159, %p160
      %p162 = scmp.ne.s32.totalorder %s154, %s156
      %p163 = scmp.eq.s32.totalorder %s20, 1
      %p164 = por %p162, %p163
      %p165 = scmp.ne.s32.totalorder %s156, %s157
      %p166 = scmp.eq.s32.totalorder %s20, 0
      %p167 = por %p165, %p166
      %p168 = scmp.ne.s32.totalorder %s156, %s157
      %p169 = scmp.eq.s32.totalorder %s21, 1
      %p170 = por %p168, %p169
      %p172 = scmp.ne.s32.totalorder %s157, %s171
      %p173 = scmp.eq.s32.totalorder %s21, 0
      %p174 = por %p172, %p173
      %s175 = ssub.s32 %s15, %s22
      %p176 = scmp.eq.s32.totalorder %s175, 0
      %s178 = sadd.s32 %s177, 1
      %s179 = scalar_select %p176, %s177, %s178
      %p182 = pneg %p176
      %p183 = scmp.eq.s32.totalorder %s15, 1
      %p184 = por %p182, %p183
      %p185 = scmp.ne.s32.totalorder %s177, %s180
      %p186 = scmp.eq.s32.totalorder %s15, 0
      %p187 = por %p185, %p186
      %p188 = scmp.ne.s32.totalorder %s177, %s180
      %p189 = scmp.eq.s32.totalorder %s20, 1
      %p190 = por %p188, %p189
      %p191 = scmp.ne.s32.totalorder %s180, %s181
      %p192 = scmp.eq.s32.totalorder %s20, 0
      %p193 = por %p191, %p192
      %p194 = scmp.ne.s32.totalorder %s180, %s181
      %p195 = scmp.eq.s32.totalorder %s21, 1
      %p196 = por %p194, %p195
      %p198 = scmp.ne.s32.totalorder %s181, %s197
      %p199 = scmp.eq.s32.totalorder %s21, 0
      %p200 = por %p198, %p199
      %p201 = scmp.le.s32.totalorder 1, %s15
      %p202 = scmp.lt.s32.totalorder %s15, 3
      %p203 = pnand %p201, %p202
      %p204 = pneg %p203
      // Predicated region
      $region9: #{layer3_forward.1} parent=5 // pred_check
        _
      $region10: #{layer3_forward.1} parent=5 // pred_check_branch
        %206 = sbr.rel (%p203) target = $region12
      $region11: #{layer3_forward.1} parent=5 // pred_region
        %s207 = ssub.s32 %s15, 1
        // Predicated region
        $region13: #{layer3_forward.1} parent=11 // pred_check
          %p208 = pneg %p62
        $region14: #{layer3_forward.1} parent=11 // pred_check_branch
          %210 = sbr.rel (%p208) target = $region16
        $region15: #{layer3_forward.1} parent=11 // pred_region
          _
        $region16: #{layer3_forward.1} parent=11 // pred_fallthru
          _
        // Predicated region
        $region17: #{layer3_forward.1} parent=11 // pred_check
          %p211 = pneg %p83
        $region18: #{layer3_forward.1} parent=11 // pred_check_branch
          %213 = sbr.rel (%p211) target = $region20
        $region19: #{layer3_forward.1} parent=11 // pred_region
          _
        $region20: #{layer3_forward.1} parent=11 // pred_fallthru
          _
        // Predicated region
        $region21: #{layer3_forward.1} parent=11 // pred_check
          %p214 = pneg %p104
        $region22: #{layer3_forward.1} parent=11 // pred_check_branch
          %216 = sbr.rel (%p214) target = $region24
        $region23: #{layer3_forward.1} parent=11 // pred_region
          _
        $region24: #{layer3_forward.1} parent=11 // pred_fallthru
          _
        // Predicated region
        $region25: #{layer3_forward.1} parent=11 // pred_check
          %p217 = pneg %p125
        $region26: #{layer3_forward.1} parent=11 // pred_check_branch
          %219 = sbr.rel (%p217) target = $region28
        $region27: #{layer3_forward.1} parent=11 // pred_region
          _
        $region28: #{layer3_forward.1} parent=11 // pred_fallthru
          _
        // Predicated region
        $region29: #{layer3_forward.1} parent=11 // pred_check
          %p220 = pneg %p146
        $region30: #{layer3_forward.1} parent=11 // pred_check_branch
          %222 = sbr.rel (%p220) target = $region32
        $region31: #{layer3_forward.1} parent=11 // pred_region
          %s224 = ssub.s32 7168, 7168
          %225 = vsyncadd [#allocation3], %s224
          %s226 = sshll.u32 [#allocation2], 4
          %s227 = int_to_ptr.vmem [resolvable:$true] %s226
          %232 = dma.hbm_to_vmem [thread:$0]  %s5, 7168, %s227, [#allocation3], 64, 64, 4
        $region32: #{layer3_forward.1} parent=11 // pred_fallthru
          _
        // Predicated region
        $region33: #{layer3_forward.1} parent=11 // pred_check
          %p233 = pneg %p167
        $region34: #{layer3_forward.1} parent=11 // pred_check_branch
          %235 = sbr.rel (%p233) target = $region36
        $region35: #{layer3_forward.1} parent=11 // pred_region
          %s237 = ssub.s32 7168, 7168
          %238 = vsyncadd [#allocation5], %s237
          %s239 = sshll.u32 [#allocation4], 4
          %s240 = int_to_ptr.vmem [resolvable:$true] %s239
          %245 = dma.hbm_to_vmem [thread:$0]  %s6, 7168, %s240, [#allocation5], 64, 64, 4
        $region36: #{layer3_forward.1} parent=11 // pred_fallthru
          _
      $region12: #{layer3_forward.1} parent=5 // pred_fallthru
        _
      %p246 = scmp.lt.s32.totalorder %s15, 2
      // Predicated region
      $region37: #{layer3_forward.1} parent=5 // pred_check
        %p247 = pneg %p246
      $region38: #{layer3_forward.1} parent=5 // pred_check_branch
        %249 = sbr.rel (%p247) target = $region40
      $region39: #{layer3_forward.1} parent=5 // pred_region
        // Predicated region
        $region41: #{layer3_forward.1} parent=39 // pred_check
          %p250 = pneg %p35
        $region42: #{layer3_forward.1} parent=39 // pred_check_branch
          %252 = sbr.rel (%p250) target = $region44
        $region43: #{layer3_forward.1} parent=39 // pred_region
          %p253 = scmp.lt.s32.totalorder %s15, 1
          %s254 = scalar_select %p253, %s15, 1
          %s255 = smul.addr %s254, 8
          %s256 = smul.addr %s255, 8
          %s257 = scalar_lea.vmem %s0, %s256
        $region44: #{layer3_forward.1} parent=39 // pred_fallthru
          _
      $region40: #{layer3_forward.1} parent=5 // pred_fallthru
        _
      %p258 = scmp.le.s32.totalorder 1, %s15
      %p259 = scmp.lt.s32.totalorder %s15, 3
      %p260 = pnand %p258, %p259
      %p261 = pneg %p260
      // Predicated region
      $region45: #{layer3_forward.1} parent=5 // pred_check
        _
      $region46: #{layer3_forward.1} parent=5 // pred_check_branch
        %263 = sbr.rel (%p260) target = $region48
      $region47: #{layer3_forward.1} parent=5 // pred_region
        %s264 = ssub.s32 %s15, 1
        // Predicated region
        $region49: #{layer3_forward.1} parent=47 // pred_check
          %p265 = pneg %p146
        $region50: #{layer3_forward.1} parent=47 // pred_check_branch
          %267 = sbr.rel (%p265) target = $region52
        $region51: #{layer3_forward.1} parent=47 // pred_region
          %268 = dma.done [#allocation3], 7168
        $region52: #{layer3_forward.1} parent=47 // pred_fallthru
          _
        // Predicated region
        $region53: #{layer3_forward.1} parent=47 // pred_check
          %p269 = pneg %p167
        $region54: #{layer3_forward.1} parent=47 // pred_check_branch
          %271 = sbr.rel (%p269) target = $region56
        $region55: #{layer3_forward.1} parent=47 // pred_region
          %272 = dma.done [#allocation5], 7168
        $region56: #{layer3_forward.1} parent=47 // pred_fallthru
          _
        %p273 = scmp.lt.s32.totalorder %s20, 1
        %s274 = scalar_select %p273, %s20, 1
        %s275 = smul.addr %s274, 8
        %s276 = smul.addr %s275, 8
        %s277 = scalar_lea.vmem %s0, %s276
        %p278 = pneg %p41
        %p279 = pneg %p38
        %p280 = pneg %p62
        %p281 = pneg %p59
        %p282 = pneg %p83
        %p283 = pneg %p80
        %p284 = pneg %p104
        %p285 = pneg %p101
        %p286 = pneg %p125
        %p287 = pneg %p122
        %p288 = pneg %p146
        %p289 = pneg %p143
        %p290 = pneg %p167
        %p291 = pneg %p164
        %p292 = pneg %p193
        %p293 = pneg %p190
        %p294 = scmp.lt.s32.totalorder %s20, 1
        %s295 = scalar_select %p294, %s20, 1
        %s296 = smul.addr %s295, 8
        %s297 = smul.addr %s296, 8
        %s298 = scalar_lea.vmem %s7, %s297
        %p299 = scmp.lt.s32.totalorder %s20, 1
        %s300 = scalar_select %p299, %s20, 1
        %s301 = smul.addr %s300, 8
        %s302 = smul.addr %s301, 8
        %s303 = scalar_lea.vmem %s0, %s302
        %p304 = scmp.lt.s32.totalorder %s20, 1
        %s305 = scalar_select %p304, %s20, 1
        %s306 = smul.addr %s305, 8
        %s307 = smul.addr %s306, 8
        %s308 = scalar_lea.vmem %s7, %s307
        %v310 = vld [vmem:[%s303] sm:$0xff]
        %v311 = vld [vmem:[%s303 + $0x8] sm:$0xff]
        %v312 = vld [vmem:[%s303 + $0x10] sm:$0xff]
        %v313 = vld [vmem:[%s303 + $0x18] sm:$0xff]
        %v314 = vld [vmem:[%s303 + $0x20] sm:$0xff]
        %v315 = vld [vmem:[%s303 + $0x28] sm:$0xff]
        %v316 = vld [vmem:[%s303 + $0x30] sm:$0xff]
        %v317 = vld [vmem:[%s303 + $0x38] sm:$0xff]
        %v318 = vld [vmem:[%s1] sm:$0x1]
        %v320 = vlaneseq
        %v321 = vshrl.u32 %v320, 7
        %v322 = vsub.s32 0, %v321
        %v323 = vrot.slane %v318, %v322
        %v325 = vmul.f32 %v310, %v323
        %v326 = vmul.f32 %v311, %v323
        %v327 = vmul.f32 %v312, %v323
        %v328 = vmul.f32 %v313, %v323
        %v329 = vmul.f32 %v314, %v323
        %v330 = vmul.f32 %v315, %v323
        %v331 = vmul.f32 %v316, %v323
        %v332 = vmul.f32 %v317, %v323
        %v333 = vld [vmem:[%s2] sm:$0x1]
        %v335 = vlaneseq
        %v336 = vshrl.u32 %v335, 7
        %v337 = vsub.s32 0, %v336
        %v338 = vrot.slane %v333, %v337
        %v340 = vadd.f32 %v325, %v338
        %v341 = vadd.f32 %v326, %v338
        %v342 = vadd.f32 %v327, %v338
        %v343 = vadd.f32 %v328, %v338
        %v344 = vadd.f32 %v329, %v338
        %v345 = vadd.f32 %v330, %v338
        %v346 = vadd.f32 %v331, %v338
        %v347 = vadd.f32 %v332, %v338
        %v348 = vmax.f32 %v340, 0.0
        %v349 = vmax.f32 %v341, 0.0
        %v350 = vmax.f32 %v342, 0.0
        %v351 = vmax.f32 %v343, 0.0
        %v352 = vmax.f32 %v344, 0.0
        %v353 = vmax.f32 %v345, 0.0
        %v354 = vmax.f32 %v346, 0.0
        %v355 = vmax.f32 %v347, 0.0
        %vm365 = vcmask 1046528
        %v366 = vrot.slane 0.0, 1
        %v367 = vrot.slane %v348, 1
        %v368 = vsel %vm365, %v366, %v367
        %v369 = vrot.slane %v349, 1
        %v370 = vsel %vm365, %v366, %v369
        %v371 = vrot.slane %v350, 1
        %v372 = vsel %vm365, %v366, %v371
        %v373 = vrot.slane %v351, 1
        %v374 = vsel %vm365, %v366, %v373
        %v375 = vrot.slane %v352, 1
        %v376 = vsel %vm365, %v366, %v375
        %v377 = vrot.slane %v353, 1
        %v378 = vsel %vm365, %v366, %v377
        %v379 = vrot.slane %v354, 1
        %v380 = vsel %vm365, %v366, %v379
        %v381 = vrot.slane %v355, 1
        %v382 = vsel %vm365, %v366, %v381
        %vm383 = vcmask 1045504
        %v384 = vrot.slane 0.0, 2
        %v385 = vrot.slane %v348, 2
        %v386 = vsel %vm383, %v384, %v385
        %v387 = vrot.slane %v349, 2
        %v388 = vsel %vm383, %v384, %v387
        %v389 = vrot.slane %v350, 2
        %v390 = vsel %vm383, %v384, %v389
        %v391 = vrot.slane %v351, 2
        %v392 = vsel %vm383, %v384, %v391
        %v393 = vrot.slane %v352, 2
        %v394 = vsel %vm383, %v384, %v393
        %v395 = vrot.slane %v353, 2
        %v396 = vsel %vm383, %v384, %v395
        %v397 = vrot.slane %v354, 2
        %v398 = vsel %vm383, %v384, %v397
        %v399 = vrot.slane %v355, 2
        %v400 = vsel %vm383, %v384, %v399
        %v401 = vrot.slane %v348, 3
        %v402 = vrot.slane %v349, 3
        %v403 = vrot.slane %v350, 3
        %v404 = vrot.slane %v351, 3
        %v405 = vrot.slane %v352, 3
        %v406 = vrot.slane %v353, 3
        %v407 = vrot.slane %v354, 3
        %v408 = vrot.slane %v355, 3
        %vm409 = vcmask 1043456
        %v410 = vrot.slane %v348, 4
        %v411 = vrot.slane 0.0, 4
        %v412 = vsel %vm409, %v410, %v411
        %v413 = vrot.slane %v349, 4
        %v414 = vsel %vm409, %v413, %v411
        %v415 = vrot.slane %v350, 4
        %v416 = vsel %vm409, %v415, %v411
        %v417 = vrot.slane %v351, 4
        %v418 = vsel %vm409, %v417, %v411
        %v419 = vrot.slane %v352, 4
        %v420 = vsel %vm409, %v419, %v411
        %v421 = vrot.slane %v353, 4
        %v422 = vsel %vm409, %v421, %v411
        %v423 = vrot.slane %v354, 4
        %v424 = vsel %vm409, %v423, %v411
        %v425 = vrot.slane %v355, 4
        %v426 = vsel %vm409, %v425, %v411
        %vm427 = vcmask 1042432
        %v428 = vrot.slane %v348, 5
        %v429 = vrot.slane 0.0, 5
        %v430 = vsel %vm427, %v428, %v429
        %v431 = vrot.slane %v349, 5
        %v432 = vsel %vm427, %v431, %v429
        %v433 = vrot.slane %v350, 5
        %v434 = vsel %vm427, %v433, %v429
        %v435 = vrot.slane %v351, 5
        %v436 = vsel %vm427, %v435, %v429
        %v437 = vrot.slane %v352, 5
        %v438 = vsel %vm427, %v437, %v429
        %v439 = vrot.slane %v353, 5
        %v440 = vsel %vm427, %v439, %v429
        %v441 = vrot.slane %v354, 5
        %v442 = vsel %vm427, %v441, %v429
        %v443 = vrot.slane %v355, 5
        %v444 = vsel %vm427, %v443, %v429
        %vm445 = vcmask 1041408
        %v446 = vrot.slane %v348, 6
        %v447 = vrot.slane 0.0, 6
        %v448 = vsel %vm445, %v446, %v447
        %v449 = vrot.slane %v349, 6
        %v450 = vsel %vm445, %v449, %v447
        %v451 = vrot.slane %v350, 6
        %v452 = vsel %vm445, %v451, %v447
        %v453 = vrot.slane %v351, 6
        %v454 = vsel %vm445, %v453, %v447
        %v455 = vrot.slane %v352, 6
        %v456 = vsel %vm445, %v455, %v447
        %v457 = vrot.slane %v353, 6
        %v458 = vsel %vm445, %v457, %v447
        %v459 = vrot.slane %v354, 6
        %v460 = vsel %vm445, %v459, %v447
        %v461 = vrot.slane %v355, 6
        %v462 = vsel %vm445, %v461, %v447
        %v463 = vsel %vm427, %v429, %v428
        %v464 = vrot.slane %v368, 5
        %v465 = vrot.slane %v367, 5
        %v466 = vsel %vm427, %v464, %v465
        %v467 = vrot.slane %v386, 5
        %v468 = vrot.slane %v385, 5
        %v469 = vsel %vm427, %v467, %v468
        %v470 = vrot.slane %v401, 5
        %v471 = vsel %vm427, %v470, %v470
        %v472 = vrot.slane %v410, 5
        %v473 = vrot.slane %v412, 5
        %v474 = vsel %vm427, %v472, %v473
        %v475 = vrot.slane %v428, 5
        %v476 = vrot.slane %v430, 5
        %v477 = vsel %vm427, %v475, %v476
        %v478 = vrot.slane %v446, 5
        %v479 = vrot.slane %v448, 5
        %v480 = vsel %vm427, %v478, %v479
        %v481 = vsel %vm427, %v429, %v431
        %v482 = vrot.slane %v370, 5
        %v483 = vrot.slane %v369, 5
        %v484 = vsel %vm427, %v482, %v483
        %v485 = vrot.slane %v388, 5
        %v486 = vrot.slane %v387, 5
        %v487 = vsel %vm427, %v485, %v486
        %v488 = vrot.slane %v402, 5
        %v489 = vsel %vm427, %v488, %v488
        %v490 = vrot.slane %v413, 5
        %v491 = vrot.slane %v414, 5
        %v492 = vsel %vm427, %v490, %v491
        %v493 = vrot.slane %v431, 5
        %v494 = vrot.slane %v432, 5
        %v495 = vsel %vm427, %v493, %v494
        %v496 = vrot.slane %v449, 5
        %v497 = vrot.slane %v450, 5
        %v498 = vsel %vm427, %v496, %v497
        %v499 = vsel %vm427, %v429, %v433
        %v500 = vrot.slane %v372, 5
        %v501 = vrot.slane %v371, 5
        %v502 = vsel %vm427, %v500, %v501
        %v503 = vrot.slane %v390, 5
        %v504 = vrot.slane %v389, 5
        %v505 = vsel %vm427, %v503, %v504
        %v506 = vrot.slane %v403, 5
        %v507 = vsel %vm427, %v506, %v506
        %v508 = vrot.slane %v415, 5
        %v509 = vrot.slane %v416, 5
        %v510 = vsel %vm427, %v508, %v509
        %v511 = vrot.slane %v433, 5
        %v512 = vrot.slane %v434, 5
        %v513 = vsel %vm427, %v511, %v512
        %v514 = vrot.slane %v451, 5
        %v515 = vrot.slane %v452, 5
        %v516 = vsel %vm427, %v514, %v515
        %v517 = vsel %vm427, %v429, %v435
        %v518 = vrot.slane %v374, 5
        %v519 = vrot.slane %v373, 5
        %v520 = vsel %vm427, %v518, %v519
        %v521 = vrot.slane %v392, 5
        %v522 = vrot.slane %v391, 5
        %v523 = vsel %vm427, %v521, %v522
        %v524 = vrot.slane %v404, 5
        %v525 = vsel %vm427, %v524, %v524
        %v526 = vrot.slane %v417, 5
        %v527 = vrot.slane %v418, 5
        %v528 = vsel %vm427, %v526, %v527
        %v529 = vrot.slane %v435, 5
        %v530 = vrot.slane %v436, 5
        %v531 = vsel %vm427, %v529, %v530
        %v532 = vrot.slane %v453, 5
        %v533 = vrot.slane %v454, 5
        %v534 = vsel %vm427, %v532, %v533
        %v535 = vsel %vm427, %v429, %v437
        %v536 = vrot.slane %v376, 5
        %v537 = vrot.slane %v375, 5
        %v538 = vsel %vm427, %v536, %v537
        %v539 = vrot.slane %v394, 5
        %v540 = vrot.slane %v393, 5
        %v541 = vsel %vm427, %v539, %v540
        %v542 = vrot.slane %v405, 5
        %v543 = vsel %vm427, %v542, %v542
        %v544 = vrot.slane %v419, 5
        %v545 = vrot.slane %v420, 5
        %v546 = vsel %vm427, %v544, %v545
        %v547 = vrot.slane %v437, 5
        %v548 = vrot.slane %v438, 5
        %v549 = vsel %vm427, %v547, %v548
        %v550 = vrot.slane %v455, 5
        %v551 = vrot.slane %v456, 5
        %v552 = vsel %vm427, %v550, %v551
        %v553 = vsel %vm427, %v429, %v439
        %v554 = vrot.slane %v378, 5
        %v555 = vrot.slane %v377, 5
        %v556 = vsel %vm427, %v554, %v555
        %v557 = vrot.slane %v396, 5
        %v558 = vrot.slane %v395, 5
        %v559 = vsel %vm427, %v557, %v558
        %v560 = vrot.slane %v406, 5
        %v561 = vsel %vm427, %v560, %v560
        %v562 = vrot.slane %v421, 5
        %v563 = vrot.slane %v422, 5
        %v564 = vsel %vm427, %v562, %v563
        %v565 = vrot.slane %v439, 5
        %v566 = vrot.slane %v440, 5
        %v567 = vsel %vm427, %v565, %v566
        %v568 = vrot.slane %v457, 5
        %v569 = vrot.slane %v458, 5
        %v570 = vsel %vm427, %v568, %v569
        %v571 = vsel %vm427, %v429, %v441
        %v572 = vrot.slane %v380, 5
        %v573 = vrot.slane %v379, 5
        %v574 = vsel %vm427, %v572, %v573
        %v575 = vrot.slane %v398, 5
        %v576 = vrot.slane %v397, 5
        %v577 = vsel %vm427, %v575, %v576
        %v578 = vrot.slane %v407, 5
        %v579 = vsel %vm427, %v578, %v578
        %v580 = vrot.slane %v423, 5
        %v581 = vrot.slane %v424, 5
        %v582 = vsel %vm427, %v580, %v581
        %v583 = vrot.slane %v441, 5
        %v584 = vrot.slane %v442, 5
        %v585 = vsel %vm427, %v583, %v584
        %v586 = vrot.slane %v459, 5
        %v587 = vrot.slane %v460, 5
        %v588 = vsel %vm427, %v586, %v587
        %v589 = vsel %vm427, %v429, %v443
        %v590 = vrot.slane %v382, 5
        %v591 = vrot.slane %v381, 5
        %v592 = vsel %vm427, %v590, %v591
        %v593 = vrot.slane %v400, 5
        %v594 = vrot.slane %v399, 5
        %v595 = vsel %vm427, %v593, %v594
        %v596 = vrot.slane %v408, 5
        %v597 = vsel %vm427, %v596, %v596
        %v598 = vrot.slane %v425, 5
        %v599 = vrot.slane %v426, 5
        %v600 = vsel %vm427, %v598, %v599
        %v601 = vrot.slane %v443, 5
        %v602 = vrot.slane %v444, 5
        %v603 = vsel %vm427, %v601, %v602
        %v604 = vrot.slane %v461, 5
        %v605 = vrot.slane %v462, 5
        %v606 = vsel %vm427, %v604, %v605
        %v663 = vpack.c.bf16 %v481, %v463
        %v664 = vpack.c.bf16 %v484, %v466
        %v665 = vpack.c.bf16 %v487, %v469
        %v666 = vpack.c.bf16 %v489, %v471
        %v667 = vpack.c.bf16 %v492, %v474
        %v668 = vpack.c.bf16 %v495, %v477
        %v669 = vpack.c.bf16 %v498, %v480
        %v670 = vpack.c.bf16 %v517, %v499
        %v671 = vpack.c.bf16 %v520, %v502
        %v672 = vpack.c.bf16 %v523, %v505
        %v673 = vpack.c.bf16 %v525, %v507
        %v674 = vpack.c.bf16 %v528, %v510
        %v675 = vpack.c.bf16 %v531, %v513
        %v676 = vpack.c.bf16 %v534, %v516
        %v677 = vpack.c.bf16 %v553, %v535
        %v678 = vpack.c.bf16 %v556, %v538
        %v679 = vpack.c.bf16 %v559, %v541
        %v680 = vpack.c.bf16 %v561, %v543
        %v681 = vpack.c.bf16 %v564, %v546
        %v682 = vpack.c.bf16 %v567, %v549
        %v683 = vpack.c.bf16 %v570, %v552
        %v684 = vpack.c.bf16 %v589, %v571
        %v685 = vpack.c.bf16 %v592, %v574
        %v686 = vpack.c.bf16 %v595, %v577
        %v687 = vpack.c.bf16 %v597, %v579
        %v688 = vpack.c.bf16 %v600, %v582
        %v689 = vpack.c.bf16 %v603, %v585
        %v690 = vpack.c.bf16 %v606, %v588
        %v691 = vld [vmem:[#allocation2] sm:$0xf]
        %v692 = vld [vmem:[#allocation2 + $0x4] sm:$0xf]
        %v693 = vld [vmem:[#allocation2 + $0x8] sm:$0xf]
        %v694 = vld [vmem:[#allocation2 + $0xc] sm:$0xf]
        %v695 = vld [vmem:[#allocation2 + $0x10] sm:$0xf]
        %v696 = vld [vmem:[#allocation2 + $0x14] sm:$0xf]
        %v697 = vld [vmem:[#allocation2 + $0x18] sm:$0xf]
        %v698 = vld [vmem:[#allocation2 + $0x1c] sm:$0xf]
        %v699 = vld [vmem:[#allocation2 + $0x20] sm:$0xf]
        %v700 = vld [vmem:[#allocation2 + $0x24] sm:$0xf]
        %v701 = vld [vmem:[#allocation2 + $0x28] sm:$0xf]
        %v702 = vld [vmem:[#allocation2 + $0x2c] sm:$0xf]
        %v703 = vld [vmem:[#allocation2 + $0x30] sm:$0xf]
        %v704 = vld [vmem:[#allocation2 + $0x34] sm:$0xf]
        %v705 = vld [vmem:[#allocation2 + $0x38] sm:$0xf]
        %v706 = vld [vmem:[#allocation2 + $0x3c] sm:$0xf]
        %v707 = vld [vmem:[#allocation2 + $0x40] sm:$0xf]
        %v708 = vld [vmem:[#allocation2 + $0x44] sm:$0xf]
        %v709 = vld [vmem:[#allocation2 + $0x48] sm:$0xf]
        %v710 = vld [vmem:[#allocation2 + $0x4c] sm:$0xf]
        %v711 = vld [vmem:[#allocation2 + $0x50] sm:$0xf]
        %v712 = vld [vmem:[#allocation2 + $0x54] sm:$0xf]
        %v713 = vld [vmem:[#allocation2 + $0x58] sm:$0xf]
        %v714 = vld [vmem:[#allocation2 + $0x5c] sm:$0xf]
        %v715 = vld [vmem:[#allocation2 + $0x60] sm:$0xf]
        %v716 = vld [vmem:[#allocation2 + $0x64] sm:$0xf]
        %v717 = vld [vmem:[#allocation2 + $0x68] sm:$0xf]
        %v718 = vld [vmem:[#allocation2 + $0x6c] sm:$0xf]
        %v719 = vld [vmem:[#allocation2 + $0x70] sm:$0xf]
        %v720 = vld [vmem:[#allocation2 + $0x74] sm:$0xf]
        %v721 = vld [vmem:[#allocation2 + $0x78] sm:$0xf]
        %v722 = vld [vmem:[#allocation2 + $0x7c] sm:$0xf]
        %v723 = vld [vmem:[#allocation2 + $0x80] sm:$0xf]
        %v724 = vld [vmem:[#allocation2 + $0x84] sm:$0xf]
        %v725 = vld [vmem:[#allocation2 + $0x88] sm:$0xf]
        %v726 = vld [vmem:[#allocation2 + $0x8c] sm:$0xf]
        %v727 = vld [vmem:[#allocation2 + $0x90] sm:$0xf]
        %v728 = vld [vmem:[#allocation2 + $0x94] sm:$0xf]
        %v729 = vld [vmem:[#allocation2 + $0x98] sm:$0xf]
        %v730 = vld [vmem:[#allocation2 + $0x9c] sm:$0xf]
        %v731 = vld [vmem:[#allocation2 + $0xa0] sm:$0xf]
        %v732 = vld [vmem:[#allocation2 + $0xa4] sm:$0xf]
        %v733 = vld [vmem:[#allocation2 + $0xa8] sm:$0xf]
        %v734 = vld [vmem:[#allocation2 + $0xac] sm:$0xf]
        %v735 = vld [vmem:[#allocation2 + $0xb0] sm:$0xf]
        %v736 = vld [vmem:[#allocation2 + $0xb4] sm:$0xf]
        %v737 = vld [vmem:[#allocation2 + $0xb8] sm:$0xf]
        %v738 = vld [vmem:[#allocation2 + $0xbc] sm:$0xf]
        %v739 = vld [vmem:[#allocation2 + $0xc0] sm:$0xf]
        %v740 = vld [vmem:[#allocation2 + $0xc4] sm:$0xf]
        %v741 = vld [vmem:[#allocation2 + $0xc8] sm:$0xf]
        %v742 = vld [vmem:[#allocation2 + $0xcc] sm:$0xf]
        %v743 = vld [vmem:[#allocation2 + $0xd0] sm:$0xf]
        %v744 = vld [vmem:[#allocation2 + $0xd4] sm:$0xf]
        %v745 = vld [vmem:[#allocation2 + $0xd8] sm:$0xf]
        %v746 = vld [vmem:[#allocation2 + $0xdc] sm:$0xf]
        %v747 = vld [vmem:[#allocation2 + $0xe0] sm:$0xf]
        %v748 = vld [vmem:[#allocation2 + $0xe4] sm:$0xf]
        %v749 = vld [vmem:[#allocation2 + $0xe8] sm:$0xf]
        %v750 = vld [vmem:[#allocation2 + $0xec] sm:$0xf]
        %v751 = vld [vmem:[#allocation2 + $0xf0] sm:$0xf]
        %v752 = vld [vmem:[#allocation2 + $0xf4] sm:$0xf]
        %v753 = vld [vmem:[#allocation2 + $0xf8] sm:$0xf]
        %v754 = vld [vmem:[#allocation2 + $0xfc] sm:$0xf]
        %v755 = vld [vmem:[#allocation2 + $0x100] sm:$0xf]
        %v756 = vld [vmem:[#allocation2 + $0x104] sm:$0xf]
        %v757 = vld [vmem:[#allocation2 + $0x108] sm:$0xf]
        %v758 = vld [vmem:[#allocation2 + $0x10c] sm:$0xf]
        %v759 = vld [vmem:[#allocation2 + $0x110] sm:$0xf]
        %v760 = vld [vmem:[#allocation2 + $0x114] sm:$0xf]
        %v761 = vld [vmem:[#allocation2 + $0x118] sm:$0xf]
        %v762 = vld [vmem:[#allocation2 + $0x11c] sm:$0xf]
        %v763 = vld [vmem:[#allocation2 + $0x120] sm:$0xf]
        %v764 = vld [vmem:[#allocation2 + $0x124] sm:$0xf]
        %v765 = vld [vmem:[#allocation2 + $0x128] sm:$0xf]
        %v766 = vld [vmem:[#allocation2 + $0x12c] sm:$0xf]
        %v767 = vld [vmem:[#allocation2 + $0x130] sm:$0xf]
        %v768 = vld [vmem:[#allocation2 + $0x134] sm:$0xf]
        %v769 = vld [vmem:[#allocation2 + $0x138] sm:$0xf]
        %v770 = vld [vmem:[#allocation2 + $0x13c] sm:$0xf]
        %v771 = vld [vmem:[#allocation2 + $0x140] sm:$0xf]
        %v772 = vld [vmem:[#allocation2 + $0x144] sm:$0xf]
        %v773 = vld [vmem:[#allocation2 + $0x148] sm:$0xf]
        %v774 = vld [vmem:[#allocation2 + $0x14c] sm:$0xf]
        %v775 = vld [vmem:[#allocation2 + $0x150] sm:$0xf]
        %v776 = vld [vmem:[#allocation2 + $0x154] sm:$0xf]
        %v777 = vld [vmem:[#allocation2 + $0x158] sm:$0xf]
        %v778 = vld [vmem:[#allocation2 + $0x15c] sm:$0xf]
        %v779 = vld [vmem:[#allocation2 + $0x160] sm:$0xf]
        %v780 = vld [vmem:[#allocation2 + $0x164] sm:$0xf]
        %v781 = vld [vmem:[#allocation2 + $0x168] sm:$0xf]
        %v782 = vld [vmem:[#allocation2 + $0x16c] sm:$0xf]
        %v783 = vld [vmem:[#allocation2 + $0x170] sm:$0xf]
        %v784 = vld [vmem:[#allocation2 + $0x174] sm:$0xf]
        %v785 = vld [vmem:[#allocation2 + $0x178] sm:$0xf]
        %v786 = vld [vmem:[#allocation2 + $0x17c] sm:$0xf]
        %v787 = vld [vmem:[#allocation2 + $0x180] sm:$0xf]
        %v788 = vld [vmem:[#allocation2 + $0x184] sm:$0xf]
        %v789 = vld [vmem:[#allocation2 + $0x188] sm:$0xf]
        %v790 = vld [vmem:[#allocation2 + $0x18c] sm:$0xf]
        %v791 = vld [vmem:[#allocation2 + $0x190] sm:$0xf]
        %v792 = vld [vmem:[#allocation2 + $0x194] sm:$0xf]
        %v793 = vld [vmem:[#allocation2 + $0x198] sm:$0xf]
        %v794 = vld [vmem:[#allocation2 + $0x19c] sm:$0xf]
        %v795 = vld [vmem:[#allocation2 + $0x1a0] sm:$0xf]
        %v796 = vld [vmem:[#allocation2 + $0x1a4] sm:$0xf]
        %v797 = vld [vmem:[#allocation2 + $0x1a8] sm:$0xf]
        %v798 = vld [vmem:[#allocation2 + $0x1ac] sm:$0xf]
        %v799 = vld [vmem:[#allocation2 + $0x1b0] sm:$0xf]
        %v800 = vld [vmem:[#allocation2 + $0x1b4] sm:$0xf]
        %v801 = vld [vmem:[#allocation2 + $0x1b8] sm:$0xf]
        %v802 = vld [vmem:[#allocation2 + $0x1bc] sm:$0xf]
        %v915 = vunpack.c.l.b16 %v691
        %v916 = vunpack.c.l.b16 %v692
        %v917 = vunpack.c.l.b16 %v693
        %v918 = vunpack.c.l.b16 %v694
        %v919 = vunpack.c.l.b16 %v695
        %v920 = vunpack.c.l.b16 %v696
        %v921 = vunpack.c.l.b16 %v697
        %v922 = vunpack.c.l.b16 %v698
        %v923 = vunpack.c.l.b16 %v699
        %v924 = vunpack.c.l.b16 %v700
        %v925 = vunpack.c.l.b16 %v701
        %v926 = vunpack.c.l.b16 %v702
        %v927 = vunpack.c.l.b16 %v703
        %v928 = vunpack.c.l.b16 %v704
        %v929 = vunpack.c.l.b16 %v705
        %v930 = vunpack.c.l.b16 %v706
        %v931 = vunpack.c.l.b16 %v707
        %v932 = vunpack.c.l.b16 %v708
        %v933 = vunpack.c.l.b16 %v709
        %v934 = vunpack.c.l.b16 %v710
        %v935 = vunpack.c.l.b16 %v711
        %v936 = vunpack.c.l.b16 %v712
        %v937 = vunpack.c.l.b16 %v713
        %v938 = vunpack.c.l.b16 %v714
        %v939 = vunpack.c.l.b16 %v715
        %v940 = vunpack.c.l.b16 %v716
        %v941 = vunpack.c.l.b16 %v717
        %v942 = vunpack.c.l.b16 %v718
        %v943 = vunpack.c.l.b16 %v719
        %v944 = vunpack.c.l.b16 %v720
        %v945 = vunpack.c.l.b16 %v721
        %v946 = vunpack.c.l.b16 %v722
        %v947 = vunpack.c.l.b16 %v723
        %v948 = vunpack.c.l.b16 %v724
        %v949 = vunpack.c.l.b16 %v725
        %v950 = vunpack.c.l.b16 %v726
        %v951 = vunpack.c.l.b16 %v727
        %v952 = vunpack.c.l.b16 %v728
        %v953 = vunpack.c.l.b16 %v729
        %v954 = vunpack.c.l.b16 %v730
        %v955 = vunpack.c.l.b16 %v731
        %v956 = vunpack.c.l.b16 %v732
        %v957 = vunpack.c.l.b16 %v733
        %v958 = vunpack.c.l.b16 %v734
        %v959 = vunpack.c.l.b16 %v735
        %v960 = vunpack.c.l.b16 %v736
        %v961 = vunpack.c.l.b16 %v737
        %v962 = vunpack.c.l.b16 %v738
        %v963 = vunpack.c.l.b16 %v739
        %v964 = vunpack.c.l.b16 %v740
        %v965 = vunpack.c.l.b16 %v741
        %v966 = vunpack.c.l.b16 %v742
        %v967 = vunpack.c.l.b16 %v743
        %v968 = vunpack.c.l.b16 %v744
        %v969 = vunpack.c.l.b16 %v745
        %v970 = vunpack.c.l.b16 %v746
        %v971 = vunpack.c.l.b16 %v747
        %v972 = vunpack.c.l.b16 %v748
        %v973 = vunpack.c.l.b16 %v749
        %v974 = vunpack.c.l.b16 %v750
        %v975 = vunpack.c.l.b16 %v751
        %v976 = vunpack.c.l.b16 %v752
        %v977 = vunpack.c.l.b16 %v753
        %v978 = vunpack.c.l.b16 %v754
        %v979 = vunpack.c.l.b16 %v755
        %v980 = vunpack.c.l.b16 %v756
        %v981 = vunpack.c.l.b16 %v757
        %v982 = vunpack.c.l.b16 %v758
        %v983 = vunpack.c.l.b16 %v759
        %v984 = vunpack.c.l.b16 %v760
        %v985 = vunpack.c.l.b16 %v761
        %v986 = vunpack.c.l.b16 %v762
        %v987 = vunpack.c.l.b16 %v763
        %v988 = vunpack.c.l.b16 %v764
        %v989 = vunpack.c.l.b16 %v765
        %v990 = vunpack.c.l.b16 %v766
        %v991 = vunpack.c.l.b16 %v767
        %v992 = vunpack.c.l.b16 %v768
        %v993 = vunpack.c.l.b16 %v769
        %v994 = vunpack.c.l.b16 %v770
        %v995 = vunpack.c.l.b16 %v771
        %v996 = vunpack.c.l.b16 %v772
        %v997 = vunpack.c.l.b16 %v773
        %v998 = vunpack.c.l.b16 %v774
        %v999 = vunpack.c.l.b16 %v775
        %v1000 = vunpack.c.l.b16 %v776
        %v1001 = vunpack.c.l.b16 %v777
        %v1002 = vunpack.c.l.b16 %v778
        %v1003 = vunpack.c.l.b16 %v779
        %v1004 = vunpack.c.l.b16 %v780
        %v1005 = vunpack.c.l.b16 %v781
        %v1006 = vunpack.c.l.b16 %v782
        %v1007 = vunpack.c.l.b16 %v783
        %v1008 = vunpack.c.l.b16 %v784
        %v1009 = vunpack.c.l.b16 %v785
        %v1010 = vunpack.c.l.b16 %v786
        %v1011 = vunpack.c.l.b16 %v787
        %v1012 = vunpack.c.l.b16 %v788
        %v1013 = vunpack.c.l.b16 %v789
        %v1014 = vunpack.c.l.b16 %v790
        %v1015 = vunpack.c.l.b16 %v791
        %v1016 = vunpack.c.l.b16 %v792
        %v1017 = vunpack.c.l.b16 %v793
        %v1018 = vunpack.c.l.b16 %v794
        %v1019 = vunpack.c.l.b16 %v795
        %v1020 = vunpack.c.l.b16 %v796
        %v1021 = vunpack.c.l.b16 %v797
        %v1022 = vunpack.c.l.b16 %v798
        %v1023 = vunpack.c.l.b16 %v799
        %v1024 = vunpack.c.l.b16 %v800
        %v1025 = vunpack.c.l.b16 %v801
        %v1026 = vunpack.c.l.b16 %v802
        %v1027 = vpack.c.b16 %v916, %v915
        %v1028 = vpack.c.b16 %v918, %v917
        %v1029 = vpack.c.b16 %v920, %v919
        %v1030 = vpack.c.b16 %v922, %v921
        %v1031 = vpack.c.b16 %v924, %v923
        %v1032 = vpack.c.b16 %v926, %v925
        %v1033 = vpack.c.b16 %v928, %v927
        %v1034 = vpack.c.b16 %v930, %v929
        %v1035 = vpack.c.b16 %v932, %v931
        %v1036 = vpack.c.b16 %v934, %v933
        %v1037 = vpack.c.b16 %v936, %v935
        %v1038 = vpack.c.b16 %v938, %v937
        %v1039 = vpack.c.b16 %v940, %v939
        %v1040 = vpack.c.b16 %v942, %v941
        %v1041 = vpack.c.b16 %v944, %v943
        %v1042 = vpack.c.b16 %v946, %v945
        %v1043 = vpack.c.b16 %v948, %v947
        %v1044 = vpack.c.b16 %v950, %v949
        %v1045 = vpack.c.b16 %v952, %v951
        %v1046 = vpack.c.b16 %v954, %v953
        %v1047 = vpack.c.b16 %v956, %v955
        %v1048 = vpack.c.b16 %v958, %v957
        %v1049 = vpack.c.b16 %v960, %v959
        %v1050 = vpack.c.b16 %v962, %v961
        %v1051 = vpack.c.b16 %v964, %v963
        %v1052 = vpack.c.b16 %v966, %v965
        %v1053 = vpack.c.b16 %v968, %v967
        %v1054 = vpack.c.b16 %v970, %v969
        %v1055 = vpack.c.b16 %v972, %v971
        %v1056 = vpack.c.b16 %v974, %v973
        %v1057 = vpack.c.b16 %v976, %v975
        %v1058 = vpack.c.b16 %v978, %v977
        %v1059 = vpack.c.b16 %v980, %v979
        %v1060 = vpack.c.b16 %v982, %v981
        %v1061 = vpack.c.b16 %v984, %v983
        %v1062 = vpack.c.b16 %v986, %v985
        %v1063 = vpack.c.b16 %v988, %v987
        %v1064 = vpack.c.b16 %v990, %v989
        %v1065 = vpack.c.b16 %v992, %v991
        %v1066 = vpack.c.b16 %v994, %v993
        %v1067 = vpack.c.b16 %v996, %v995
        %v1068 = vpack.c.b16 %v998, %v997
        %v1069 = vpack.c.b16 %v1000, %v999
        %v1070 = vpack.c.b16 %v1002, %v1001
        %v1071 = vpack.c.b16 %v1004, %v1003
        %v1072 = vpack.c.b16 %v1006, %v1005
        %v1073 = vpack.c.b16 %v1008, %v1007
        %v1074 = vpack.c.b16 %v1010, %v1009
        %v1075 = vpack.c.b16 %v1012, %v1011
        %v1076 = vpack.c.b16 %v1014, %v1013
        %v1077 = vpack.c.b16 %v1016, %v1015
        %v1078 = vpack.c.b16 %v1018, %v1017
        %v1079 = vpack.c.b16 %v1020, %v1019
        %v1080 = vpack.c.b16 %v1022, %v1021
        %v1081 = vpack.c.b16 %v1024, %v1023
        %v1082 = vpack.c.b16 %v1026, %v1025
        %1139 = vmatprep.subr.bf16.mxu0 0
        %1140 = vmatpush1.bf16.msra.mxu0 %v1027
        %1141 = vmatprep.subr.bf16.mxu0 0
        %1142 = vmatpush1.bf16.msra.mxu0 %v1028
        %1143 = vmatprep.subr.bf16.mxu0 0
        %1144 = vmatpush1.bf16.msra.mxu0 %v1029
        %1145 = vmatprep.subr.bf16.mxu0 0
        %1146 = vmatpush1.bf16.msra.mxu0 %v1030
        %1147 = vmatprep.subr.bf16.mxu0 0
        %1148 = vmatpush1.bf16.msra.mxu0 %v1031
        %1149 = vmatprep.subr.bf16.mxu0 0
        %1150 = vmatpush1.bf16.msra.mxu0 %v1032
        %1151 = vmatprep.subr.bf16.mxu0 0
        %1152 = vmatpush1.bf16.msra.mxu0 %v1033
        %1153 = vmatprep.subr.bf16.mxu0 0
        %1154 = vmatpush1.bf16.msra.mxu0 %v1034
        %1155 = vmatprep.subr.bf16.mxu0 0
        %1156 = vmatpush1.bf16.msra.mxu0 %v1035
        %1157 = vmatprep.subr.bf16.mxu0 0
        %1158 = vmatpush1.bf16.msra.mxu0 %v1036
        %1159 = vmatprep.subr.bf16.mxu0 0
        %1160 = vmatpush1.bf16.msra.mxu0 %v1037
        %1161 = vmatprep.subr.bf16.mxu0 0
        %1162 = vmatpush1.bf16.msra.mxu0 %v1038
        %1163 = vmatprep.subr.bf16.mxu0 0
        %1164 = vmatpush1.bf16.msra.mxu0 %v1039
        %1165 = vmatprep.subr.bf16.mxu0 0
        %1166 = vmatpush1.bf16.msra.mxu0 %v1040
        %1167 = vmatprep.subr.bf16.mxu0 0
        %1168 = vmatpush1.bf16.msra.mxu0 %v1041
        %1169 = vmatprep.subr.bf16.mxu0 0
        %1170 = vmatpush1.bf16.msra.mxu0 %v1042
        %1171 = vmatprep.mubr.bf16.mxu0 %v664
        %1172 = vmatmul.mubr.bf16.gmra.mrb[0].mxu0 %v663
        %v1173 = vpop.f32.mrb[0].mxu0
        %v1174 = vadd.f32 0.0, %v1173
        %v1175 = vpop.f32.mrb[0].mxu0
        %v1176 = vpop.f32.mrb[0].mxu0
        %v1177 = vadd.f32 0.0, %v1176
        %v1178 = vpop.f32.mrb[0].mxu0
        %1179 = vmatprep.mubr.bf16.mxu0 %v671
        %1180 = vmatmul.mubr.bf16.gmra.mrb[0].mxu0 %v670
        %v1181 = vpop.f32.mrb[0].mxu0
        %v1182 = vadd.f32 0.0, %v1181
        %v1183 = vpop.f32.mrb[0].mxu0
        %v1184 = vpop.f32.mrb[0].mxu0
        %v1185 = vadd.f32 0.0, %v1184
        %v1186 = vpop.f32.mrb[0].mxu0
        %1187 = vmatprep.mubr.bf16.mxu0 %v678
        %1188 = vmatmul.mubr.bf16.gmra.mrb[0].mxu0 %v677
        %v1189 = vpop.f32.mrb[0].mxu0
        %v1190 = vadd.f32 0.0, %v1189
        %v1191 = vpop.f32.mrb[0].mxu0
        %v1192 = vpop.f32.mrb[0].mxu0
        %v1193 = vadd.f32 0.0, %v1192
        %v1194 = vpop.f32.mrb[0].mxu0
        %1195 = vmatprep.mubr.bf16.mxu0 %v685
        %1196 = vmatmul.mubr.bf16.gmra.mrb[0].mxu0 %v684
        %v1197 = vpop.f32.mrb[0].mxu0
        %v1198 = vadd.f32 0.0, %v1197
        %v1199 = vpop.f32.mrb[0].mxu0
        %v1200 = vpop.f32.mrb[0].mxu0
        %v1201 = vadd.f32 0.0, %v1200
        %v1202 = vpop.f32.mrb[0].mxu0
        %1203 = vdwg.mxu0
        %1204 = vmatprep.subr.bf16.mxu0 0
        %1205 = vmatpush1.bf16.msra.mxu0 %v1043
        %1206 = vmatprep.subr.bf16.mxu0 0
        %1207 = vmatpush1.bf16.msra.mxu0 %v1044
        %1208 = vmatprep.subr.bf16.mxu0 0
        %1209 = vmatpush1.bf16.msra.mxu0 %v1045
        %1210 = vmatprep.subr.bf16.mxu0 0
        %1211 = vmatpush1.bf16.msra.mxu0 %v1046
        %1212 = vmatprep.subr.bf16.mxu0 0
        %1213 = vmatpush1.bf16.msra.mxu0 %v1047
        %1214 = vmatprep.subr.bf16.mxu0 0
        %1215 = vmatpush1.bf16.msra.mxu0 %v1048
        %1216 = vmatprep.subr.bf16.mxu0 0
        %1217 = vmatpush1.bf16.msra.mxu0 %v1049
        %1218 = vmatprep.subr.bf16.mxu0 0
        %1219 = vmatpush1.bf16.msra.mxu0 %v1050
        %1220 = vmatprep.subr.bf16.mxu0 0
        %1221 = vmatpush1.bf16.msra.mxu0 %v1051
        %1222 = vmatprep.subr.bf16.mxu0 0
        %1223 = vmatpush1.bf16.msra.mxu0 %v1052
        %1224 = vmatprep.subr.bf16.mxu0 0
        %1225 = vmatpush1.bf16.msra.mxu0 %v1053
        %1226 = vmatprep.subr.bf16.mxu0 0
        %1227 = vmatpush1.bf16.msra.mxu0 %v1054
        %1228 = vmatprep.subr.bf16.mxu0 0
        %1229 = vmatpush1.bf16.msra.mxu0 %v1055
        %1230 = vmatprep.subr.bf16.mxu0 0
        %1231 = vmatpush1.bf16.msra.mxu0 %v1056
        %1232 = vmatprep.subr.bf16.mxu0 0
        %1233 = vmatpush1.bf16.msra.mxu0 %v1057
        %1234 = vmatprep.subr.bf16.mxu0 0
        %1235 = vmatpush1.bf16.msra.mxu0 %v1058
        %1236 = vmatprep.mubr.bf16.mxu0 %v666
        %1237 = vmatmul.mubr.bf16.gmra.mrb[0].mxu0 %v665
        %v1238 = vpop.f32.mrb[0].mxu0
        %v1239 = vadd.f32 %v1174, %v1238
        %v1240 = vpop.f32.mrb[0].mxu0
        %v1241 = vpop.f32.mrb[0].mxu0
        %v1242 = vadd.f32 %v1177, %v1241
        %v1243 = vpop.f32.mrb[0].mxu0
        %1244 = vmatprep.mubr.bf16.mxu0 %v673
        %1245 = vmatmul.mubr.bf16.gmra.mrb[0].mxu0 %v672
        %v1246 = vpop.f32.mrb[0].mxu0
        %v1247 = vadd.f32 %v1182, %v1246
        %v1248 = vpop.f32.mrb[0].mxu0
        %v1249 = vpop.f32.mrb[0].mxu0
        %v1250 = vadd.f32 %v1185, %v1249
        %v1251 = vpop.f32.mrb[0].mxu0
        %1252 = vmatprep.mubr.bf16.mxu0 %v680
        %1253 = vmatmul.mubr.bf16.gmra.mrb[0].mxu0 %v679
        %v1254 = vpop.f32.mrb[0].mxu0
        %v1255 = vadd.f32 %v1190, %v1254
        %v1256 = vpop.f32.mrb[0].mxu0
        %v1257 = vpop.f32.mrb[0].mxu0
        %v1258 = vadd.f32 %v1193, %v1257
        %v1259 = vpop.f32.mrb[0].mxu0
        %1260 = vmatprep.mubr.bf16.mxu0 %v687
        %1261 = vmatmul.mubr.bf16.gmra.mrb[0].mxu0 %v686
        %v1262 = vpop.f32.mrb[0].mxu0
        %v1263 = vadd.f32 %v1198, %v1262
        %v1264 = vpop.f32.mrb[0].mxu0
        %v1265 = vpop.f32.mrb[0].mxu0
        %v1266 = vadd.f32 %v1201, %v1265
        %v1267 = vpop.f32.mrb[0].mxu0
        %1268 = vdwg.mxu0
        %1269 = vmatprep.subr.bf16.mxu0 0
        %1270 = vmatpush1.bf16.msra.mxu0 %v1059
        %1271 = vmatprep.subr.bf16.mxu0 0
        %1272 = vmatpush1.bf16.msra.mxu0 %v1060
        %1273 = vmatprep.subr.bf16.mxu0 0
        %1274 = vmatpush1.bf16.msra.mxu0 %v1061
        %1275 = vmatprep.subr.bf16.mxu0 0
        %1276 = vmatpush1.bf16.msra.mxu0 %v1062
        %1277 = vmatprep.subr.bf16.mxu0 0
        %1278 = vmatpush1.bf16.msra.mxu0 %v1063
        %1279 = vmatprep.subr.bf16.mxu0 0
        %1280 = vmatpush1.bf16.msra.mxu0 %v1064
        %1281 = vmatprep.subr.bf16.mxu0 0
        %1282 = vmatpush1.bf16.msra.mxu0 %v1065
        %1283 = vmatprep.subr.bf16.mxu0 0
        %1284 = vmatpush1.bf16.msra.mxu0 %v1066
        %1285 = vmatprep.subr.bf16.mxu0 0
        %1286 = vmatpush1.bf16.msra.mxu0 %v1067
        %1287 = vmatprep.subr.bf16.mxu0 0
        %1288 = vmatpush1.bf16.msra.mxu0 %v1068
        %1289 = vmatprep.subr.bf16.mxu0 0
        %1290 = vmatpush1.bf16.msra.mxu0 %v1069
        %1291 = vmatprep.subr.bf16.mxu0 0
        %1292 = vmatpush1.bf16.msra.mxu0 %v1070
        %1293 = vmatprep.subr.bf16.mxu0 0
        %1294 = vmatpush1.bf16.msra.mxu0 %v1071
        %1295 = vmatprep.subr.bf16.mxu0 0
        %1296 = vmatpush1.bf16.msra.mxu0 %v1072
        %1297 = vmatprep.subr.bf16.mxu0 0
        %1298 = vmatpush1.bf16.msra.mxu0 %v1073
        %1299 = vmatprep.subr.bf16.mxu0 0
        %1300 = vmatpush1.bf16.msra.mxu0 %v1074
        %1301 = vmatprep.mubr.bf16.mxu0 %v668
        %1302 = vmatmul.mubr.bf16.gmra.mrb[0].mxu0 %v667
        %v1303 = vpop.f32.mrb[0].mxu0
        %v1304 = vadd.f32 %v1239, %v1303
        %v1305 = vpop.f32.mrb[0].mxu0
        %v1306 = vpop.f32.mrb[0].mxu0
        %v1307 = vadd.f32 %v1242, %v1306
        %v1308 = vpop.f32.mrb[0].mxu0
        %1309 = vmatprep.mubr.bf16.mxu0 %v675
        %1310 = vmatmul.mubr.bf16.gmra.mrb[0].mxu0 %v674
        %v1311 = vpop.f32.mrb[0].mxu0
        %v1312 = vadd.f32 %v1247, %v1311
        %v1313 = vpop.f32.mrb[0].mxu0
        %v1314 = vpop.f32.mrb[0].mxu0
        %v1315 = vadd.f32 %v1250, %v1314
        %v1316 = vpop.f32.mrb[0].mxu0
        %1317 = vmatprep.mubr.bf16.mxu0 %v682
        %1318 = vmatmul.mubr.bf16.gmra.mrb[0].mxu0 %v681
        %v1319 = vpop.f32.mrb[0].mxu0
        %v1320 = vadd.f32 %v1255, %v1319
        %v1321 = vpop.f32.mrb[0].mxu0
        %v1322 = vpop.f32.mrb[0].mxu0
        %v1323 = vadd.f32 %v1258, %v1322
        %v1324 = vpop.f32.mrb[0].mxu0
        %1325 = vmatprep.mubr.bf16.mxu0 %v689
        %1326 = vmatmul.mubr.bf16.gmra.mrb[0].mxu0 %v688
        %v1327 = vpop.f32.mrb[0].mxu0
        %v1328 = vadd.f32 %v1263, %v1327
        %v1329 = vpop.f32.mrb[0].mxu0
        %v1330 = vpop.f32.mrb[0].mxu0
        %v1331 = vadd.f32 %v1266, %v1330
        %v1332 = vpop.f32.mrb[0].mxu0
        %1333 = vdwg.mxu0
        %1334 = vmatprep.subr.bf16.mxu0 0
        %1335 = vmatpush1.bf16.msra.mxu0 %v1075
        %1336 = vmatprep.subr.bf16.mxu0 0
        %1337 = vmatpush1.bf16.msra.mxu0 %v1076
        %1338 = vmatprep.subr.bf16.mxu0 0
        %1339 = vmatpush1.bf16.msra.mxu0 %v1077
        %1340 = vmatprep.subr.bf16.mxu0 0
        %1341 = vmatpush1.bf16.msra.mxu0 %v1078
        %1342 = vmatprep.subr.bf16.mxu0 0
        %1343 = vmatpush1.bf16.msra.mxu0 %v1079
        %1344 = vmatprep.subr.bf16.mxu0 0
        %1345 = vmatpush1.bf16.msra.mxu0 %v1080
        %1346 = vmatprep.subr.bf16.mxu0 0
        %1347 = vmatpush1.bf16.msra.mxu0 %v1081
        %1348 = vmatprep.subr.bf16.mxu0 0
        %1349 = vmatpush1.bf16.msra.mxu0 %v1082
        %1350 = vmatprep.subr.bf16.mxu0 0
        %1351 = vmatpush1.bf16.msra.mxu0 0
        %1352 = vmatprep.subr.bf16.mxu0 0
        %1353 = vmatpush1.bf16.msra.mxu0 0
        %1354 = vmatprep.subr.bf16.mxu0 0
        %1355 = vmatpush1.bf16.msra.mxu0 0
        %1356 = vmatprep.subr.bf16.mxu0 0
        %1357 = vmatpush1.bf16.msra.mxu0 0
        %1358 = vmatprep.subr.bf16.mxu0 0
        %1359 = vmatpush1.bf16.msra.mxu0 0
        %1360 = vmatprep.subr.bf16.mxu0 0
        %1361 = vmatpush1.bf16.msra.mxu0 0
        %1362 = vmatprep.subr.bf16.mxu0 0
        %1363 = vmatpush1.bf16.msra.mxu0 0
        %1364 = vmatprep.subr.bf16.mxu0 0
        %1365 = vmatpush1.bf16.msra.mxu0 0
        %1366 = vmatprep.mubr.bf16.mxu0 0
        %1367 = vmatmul.mubr.bf16.gmra.mrb[0].mxu0 %v669
        %v1368 = vpop.f32.mrb[0].mxu0
        %v1369 = vadd.f32 %v1304, %v1368
        %v1370 = vpop.f32.mrb[0].mxu0
        %v1371 = vpop.f32.mrb[0].mxu0
        %v1372 = vadd.f32 %v1307, %v1371
        %v1373 = vpop.f32.mrb[0].mxu0
        %1374 = vmatprep.mubr.bf16.mxu0 0
        %1375 = vmatmul.mubr.bf16.gmra.mrb[0].mxu0 %v676
        %v1376 = vpop.f32.mrb[0].mxu0
        %v1377 = vadd.f32 %v1312, %v1376
        %v1378 = vpop.f32.mrb[0].mxu0
        %v1379 = vpop.f32.mrb[0].mxu0
        %v1380 = vadd.f32 %v1315, %v1379
        %v1381 = vpop.f32.mrb[0].mxu0
        %1382 = vmatprep.mubr.bf16.mxu0 0
        %1383 = vmatmul.mubr.bf16.gmra.mrb[0].mxu0 %v683
        %v1384 = vpop.f32.mrb[0].mxu0
        %v1385 = vadd.f32 %v1320, %v1384
        %v1386 = vpop.f32.mrb[0].mxu0
        %v1387 = vpop.f32.mrb[0].mxu0
        %v1388 = vadd.f32 %v1323, %v1387
        %v1389 = vpop.f32.mrb[0].mxu0
        %1390 = vmatprep.mubr.bf16.mxu0 0
        %1391 = vmatmul.mubr.bf16.gmra.mrb[0].mxu0 %v690
        %v1392 = vpop.f32.mrb[0].mxu0
        %v1393 = vadd.f32 %v1328, %v1392
        %v1394 = vpop.f32.mrb[0].mxu0
        %v1395 = vpop.f32.mrb[0].mxu0
        %v1396 = vadd.f32 %v1331, %v1395
        %v1397 = vpop.f32.mrb[0].mxu0
        %1398 = vdwg.mxu0
        %v1399 = vld [vmem:[%s3] sm:$0x1]
        %v1401 = vlaneseq
        %v1402 = vshrl.u32 %v1401, 7
        %v1403 = vsub.s32 0, %v1402
        %v1404 = vrot.slane %v1399, %v1403
        %v1406 = vmul.f32 %v1369, %v1404
        %v1407 = vmul.f32 %v1372, %v1404
        %v1408 = vmul.f32 %v1377, %v1404
        %v1409 = vmul.f32 %v1380, %v1404
        %v1410 = vmul.f32 %v1385, %v1404
        %v1411 = vmul.f32 %v1388, %v1404
        %v1412 = vmul.f32 %v1393, %v1404
        %v1413 = vmul.f32 %v1396, %v1404
        %v1414 = vld [vmem:[%s4] sm:$0x1]
        %v1416 = vlaneseq
        %v1417 = vshrl.u32 %v1416, 7
        %v1418 = vsub.s32 0, %v1417
        %v1419 = vrot.slane %v1414, %v1418
        %v1421 = vadd.f32 %v1406, %v1419
        %v1422 = vadd.f32 %v1407, %v1419
        %v1423 = vadd.f32 %v1408, %v1419
        %v1424 = vadd.f32 %v1409, %v1419
        %v1425 = vadd.f32 %v1410, %v1419
        %v1426 = vadd.f32 %v1411, %v1419
        %v1427 = vadd.f32 %v1412, %v1419
        %v1428 = vadd.f32 %v1413, %v1419
        %v1429 = vmax.f32 %v1421, 0.0
        %v1430 = vmax.f32 %v1422, 0.0
        %v1431 = vmax.f32 %v1423, 0.0
        %v1432 = vmax.f32 %v1424, 0.0
        %v1433 = vmax.f32 %v1425, 0.0
        %v1434 = vmax.f32 %v1426, 0.0
        %v1435 = vmax.f32 %v1427, 0.0
        %v1436 = vmax.f32 %v1428, 0.0
        %v1437 = vpack.c.bf16 0.0, 0.0
        %v1438 = vpack.c.bf16 %v1429, 0.0
        %v1439 = vpack.c.bf16 %v1430, %v1429
        %v1440 = vpack.c.bf16 %v1431, %v1430
        %v1441 = vpack.c.bf16 %v1432, %v1431
        %v1442 = vpack.c.bf16 %v1433, %v1432
        %v1443 = vpack.c.bf16 %v1434, %v1433
        %v1444 = vpack.c.bf16 %v1435, %v1434
        %v1445 = vpack.c.bf16 %v1436, %v1435
        %v1446 = vpack.c.bf16 0.0, %v1436
        %v1447 = vld [vmem:[#allocation4] sm:$0xf]
        %v1448 = vld [vmem:[#allocation4 + $0x4] sm:$0xf]
        %v1449 = vld [vmem:[#allocation4 + $0x8] sm:$0xf]
        %v1450 = vld [vmem:[#allocation4 + $0xc] sm:$0xf]
        %v1451 = vld [vmem:[#allocation4 + $0x10] sm:$0xf]
        %v1452 = vld [vmem:[#allocation4 + $0x14] sm:$0xf]
        %v1453 = vld [vmem:[#allocation4 + $0x18] sm:$0xf]
        %v1454 = vld [vmem:[#allocation4 + $0x1c] sm:$0xf]
        %v1455 = vld [vmem:[#allocation4 + $0x20] sm:$0xf]
        %v1456 = vld [vmem:[#allocation4 + $0x24] sm:$0xf]
        %v1457 = vld [vmem:[#allocation4 + $0x28] sm:$0xf]
        %v1458 = vld [vmem:[#allocation4 + $0x2c] sm:$0xf]
        %v1459 = vld [vmem:[#allocation4 + $0x30] sm:$0xf]
        %v1460 = vld [vmem:[#allocation4 + $0x34] sm:$0xf]
        %v1461 = vld [vmem:[#allocation4 + $0x38] sm:$0xf]
        %v1462 = vld [vmem:[#allocation4 + $0x3c] sm:$0xf]
        %v1463 = vld [vmem:[#allocation4 + $0x40] sm:$0xf]
        %v1464 = vld [vmem:[#allocation4 + $0x44] sm:$0xf]
        %v1465 = vld [vmem:[#allocation4 + $0x48] sm:$0xf]
        %v1466 = vld [vmem:[#allocation4 + $0x4c] sm:$0xf]
        %v1467 = vld [vmem:[#allocation4 + $0x50] sm:$0xf]
        %v1468 = vld [vmem:[#allocation4 + $0x54] sm:$0xf]
        %v1469 = vld [vmem:[#allocation4 + $0x58] sm:$0xf]
        %v1470 = vld [vmem:[#allocation4 + $0x5c] sm:$0xf]
        %v1471 = vld [vmem:[#allocation4 + $0x60] sm:$0xf]
        %v1472 = vld [vmem:[#allocation4 + $0x64] sm:$0xf]
        %v1473 = vld [vmem:[#allocation4 + $0x68] sm:$0xf]
        %v1474 = vld [vmem:[#allocation4 + $0x6c] sm:$0xf]
        %v1475 = vld [vmem:[#allocation4 + $0x70] sm:$0xf]
        %v1476 = vld [vmem:[#allocation4 + $0x74] sm:$0xf]
        %v1477 = vld [vmem:[#allocation4 + $0x78] sm:$0xf]
        %v1478 = vld [vmem:[#allocation4 + $0x7c] sm:$0xf]
        %v1479 = vld [vmem:[#allocation4 + $0x80] sm:$0xf]
        %v1480 = vld [vmem:[#allocation4 + $0x84] sm:$0xf]
        %v1481 = vld [vmem:[#allocation4 + $0x88] sm:$0xf]
        %v1482 = vld [vmem:[#allocation4 + $0x8c] sm:$0xf]
        %v1483 = vld [vmem:[#allocation4 + $0x90] sm:$0xf]
        %v1484 = vld [vmem:[#allocation4 + $0x94] sm:$0xf]
        %v1485 = vld [vmem:[#allocation4 + $0x98] sm:$0xf]
        %v1486 = vld [vmem:[#allocation4 + $0x9c] sm:$0xf]
        %v1487 = vld [vmem:[#allocation4 + $0xa0] sm:$0xf]
        %v1488 = vld [vmem:[#allocation4 + $0xa4] sm:$0xf]
        %v1489 = vld [vmem:[#allocation4 + $0xa8] sm:$0xf]
        %v1490 = vld [vmem:[#allocation4 + $0xac] sm:$0xf]
        %v1491 = vld [vmem:[#allocation4 + $0xb0] sm:$0xf]
        %v1492 = vld [vmem:[#allocation4 + $0xb4] sm:$0xf]
        %v1493 = vld [vmem:[#allocation4 + $0xb8] sm:$0xf]
        %v1494 = vld [vmem:[#allocation4 + $0xbc] sm:$0xf]
        %v1495 = vld [vmem:[#allocation4 + $0xc0] sm:$0xf]
        %v1496 = vld [vmem:[#allocation4 + $0xc4] sm:$0xf]
        %v1497 = vld [vmem:[#allocation4 + $0xc8] sm:$0xf]
        %v1498 = vld [vmem:[#allocation4 + $0xcc] sm:$0xf]
        %v1499 = vld [vmem:[#allocation4 + $0xd0] sm:$0xf]
        %v1500 = vld [vmem:[#allocation4 + $0xd4] sm:$0xf]
        %v1501 = vld [vmem:[#allocation4 + $0xd8] sm:$0xf]
        %v1502 = vld [vmem:[#allocation4 + $0xdc] sm:$0xf]
        %v1503 = vld [vmem:[#allocation4 + $0xe0] sm:$0xf]
        %v1504 = vld [vmem:[#allocation4 + $0xe4] sm:$0xf]
        %v1505 = vld [vmem:[#allocation4 + $0xe8] sm:$0xf]
        %v1506 = vld [vmem:[#allocation4 + $0xec] sm:$0xf]
        %v1507 = vld [vmem:[#allocation4 + $0xf0] sm:$0xf]
        %v1508 = vld [vmem:[#allocation4 + $0xf4] sm:$0xf]
        %v1509 = vld [vmem:[#allocation4 + $0xf8] sm:$0xf]
        %v1510 = vld [vmem:[#allocation4 + $0xfc] sm:$0xf]
        %v1511 = vld [vmem:[#allocation4 + $0x100] sm:$0xf]
        %v1512 = vld [vmem:[#allocation4 + $0x104] sm:$0xf]
        %v1513 = vld [vmem:[#allocation4 + $0x108] sm:$0xf]
        %v1514 = vld [vmem:[#allocation4 + $0x10c] sm:$0xf]
        %v1515 = vld [vmem:[#allocation4 + $0x110] sm:$0xf]
        %v1516 = vld [vmem:[#allocation4 + $0x114] sm:$0xf]
        %v1517 = vld [vmem:[#allocation4 + $0x118] sm:$0xf]
        %v1518 = vld [vmem:[#allocation4 + $0x11c] sm:$0xf]
        %v1519 = vld [vmem:[#allocation4 + $0x120] sm:$0xf]
        %v1520 = vld [vmem:[#allocation4 + $0x124] sm:$0xf]
        %v1521 = vld [vmem:[#allocation4 + $0x128] sm:$0xf]
        %v1522 = vld [vmem:[#allocation4 + $0x12c] sm:$0xf]
        %v1523 = vld [vmem:[#allocation4 + $0x130] sm:$0xf]
        %v1524 = vld [vmem:[#allocation4 + $0x134] sm:$0xf]
        %v1525 = vld [vmem:[#allocation4 + $0x138] sm:$0xf]
        %v1526 = vld [vmem:[#allocation4 + $0x13c] sm:$0xf]
        %v1527 = vld [vmem:[#allocation4 + $0x140] sm:$0xf]
        %v1528 = vld [vmem:[#allocation4 + $0x144] sm:$0xf]
        %v1529 = vld [vmem:[#allocation4 + $0x148] sm:$0xf]
        %v1530 = vld [vmem:[#allocation4 + $0x14c] sm:$0xf]
        %v1531 = vld [vmem:[#allocation4 + $0x150] sm:$0xf]
        %v1532 = vld [vmem:[#allocation4 + $0x154] sm:$0xf]
        %v1533 = vld [vmem:[#allocation4 + $0x158] sm:$0xf]
        %v1534 = vld [vmem:[#allocation4 + $0x15c] sm:$0xf]
        %v1535 = vld [vmem:[#allocation4 + $0x160] sm:$0xf]
        %v1536 = vld [vmem:[#allocation4 + $0x164] sm:$0xf]
        %v1537 = vld [vmem:[#allocation4 + $0x168] sm:$0xf]
        %v1538 = vld [vmem:[#allocation4 + $0x16c] sm:$0xf]
        %v1539 = vld [vmem:[#allocation4 + $0x170] sm:$0xf]
        %v1540 = vld [vmem:[#allocation4 + $0x174] sm:$0xf]
        %v1541 = vld [vmem:[#allocation4 + $0x178] sm:$0xf]
        %v1542 = vld [vmem:[#allocation4 + $0x17c] sm:$0xf]
        %v1543 = vld [vmem:[#allocation4 + $0x180] sm:$0xf]
        %v1544 = vld [vmem:[#allocation4 + $0x184] sm:$0xf]
        %v1545 = vld [vmem:[#allocation4 + $0x188] sm:$0xf]
        %v1546 = vld [vmem:[#allocation4 + $0x18c] sm:$0xf]
        %v1547 = vld [vmem:[#allocation4 + $0x190] sm:$0xf]
        %v1548 = vld [vmem:[#allocation4 + $0x194] sm:$0xf]
        %v1549 = vld [vmem:[#allocation4 + $0x198] sm:$0xf]
        %v1550 = vld [vmem:[#allocation4 + $0x19c] sm:$0xf]
        %v1551 = vld [vmem:[#allocation4 + $0x1a0] sm:$0xf]
        %v1552 = vld [vmem:[#allocation4 + $0x1a4] sm:$0xf]
        %v1553 = vld [vmem:[#allocation4 + $0x1a8] sm:$0xf]
        %v1554 = vld [vmem:[#allocation4 + $0x1ac] sm:$0xf]
        %v1555 = vld [vmem:[#allocation4 + $0x1b0] sm:$0xf]
        %v1556 = vld [vmem:[#allocation4 + $0x1b4] sm:$0xf]
        %v1557 = vld [vmem:[#allocation4 + $0x1b8] sm:$0xf]
        %v1558 = vld [vmem:[#allocation4 + $0x1bc] sm:$0xf]
        %v1671 = vunpack.c.l.b16 %v1447
        %v1672 = vunpack.c.l.b16 %v1448
        %v1673 = vunpack.c.l.b16 %v1449
        %v1674 = vunpack.c.l.b16 %v1450
        %v1675 = vunpack.c.l.b16 %v1451
        %v1676 = vunpack.c.l.b16 %v1452
        %v1677 = vunpack.c.l.b16 %v1453
        %v1678 = vunpack.c.l.b16 %v1454
        %v1679 = vunpack.c.l.b16 %v1455
        %v1680 = vunpack.c.l.b16 %v1456
        %v1681 = vunpack.c.l.b16 %v1457
        %v1682 = vunpack.c.l.b16 %v1458
        %v1683 = vunpack.c.l.b16 %v1459
        %v1684 = vunpack.c.l.b16 %v1460
        %v1685 = vunpack.c.l.b16 %v1461
        %v1686 = vunpack.c.l.b16 %v1462
        %v1687 = vunpack.c.l.b16 %v1463
        %v1688 = vunpack.c.l.b16 %v1464
        %v1689 = vunpack.c.l.b16 %v1465
        %v1690 = vunpack.c.l.b16 %v1466
        %v1691 = vunpack.c.l.b16 %v1467
        %v1692 = vunpack.c.l.b16 %v1468
        %v1693 = vunpack.c.l.b16 %v1469
        %v1694 = vunpack.c.l.b16 %v1470
        %v1695 = vunpack.c.l.b16 %v1471
        %v1696 = vunpack.c.l.b16 %v1472
        %v1697 = vunpack.c.l.b16 %v1473
        %v1698 = vunpack.c.l.b16 %v1474
        %v1699 = vunpack.c.l.b16 %v1475
        %v1700 = vunpack.c.l.b16 %v1476
        %v1701 = vunpack.c.l.b16 %v1477
        %v1702 = vunpack.c.l.b16 %v1478
        %v1703 = vunpack.c.l.b16 %v1479
        %v1704 = vunpack.c.l.b16 %v1480
        %v1705 = vunpack.c.l.b16 %v1481
        %v1706 = vunpack.c.l.b16 %v1482
        %v1707 = vunpack.c.l.b16 %v1483
        %v1708 = vunpack.c.l.b16 %v1484
        %v1709 = vunpack.c.l.b16 %v1485
        %v1710 = vunpack.c.l.b16 %v1486
        %v1711 = vunpack.c.l.b16 %v1487
        %v1712 = vunpack.c.l.b16 %v1488
        %v1713 = vunpack.c.l.b16 %v1489
        %v1714 = vunpack.c.l.b16 %v1490
        %v1715 = vunpack.c.l.b16 %v1491
        %v1716 = vunpack.c.l.b16 %v1492
        %v1717 = vunpack.c.l.b16 %v1493
        %v1718 = vunpack.c.l.b16 %v1494
        %v1719 = vunpack.c.l.b16 %v1495
        %v1720 = vunpack.c.l.b16 %v1496
        %v1721 = vunpack.c.l.b16 %v1497
        %v1722 = vunpack.c.l.b16 %v1498
        %v1723 = vunpack.c.l.b16 %v1499
        %v1724 = vunpack.c.l.b16 %v1500
        %v1725 = vunpack.c.l.b16 %v1501
        %v1726 = vunpack.c.l.b16 %v1502
        %v1727 = vunpack.c.l.b16 %v1503
        %v1728 = vunpack.c.l.b16 %v1504
        %v1729 = vunpack.c.l.b16 %v1505
        %v1730 = vunpack.c.l.b16 %v1506
        %v1731 = vunpack.c.l.b16 %v1507
        %v1732 = vunpack.c.l.b16 %v1508
        %v1733 = vunpack.c.l.b16 %v1509
        %v1734 = vunpack.c.l.b16 %v1510
        %v1735 = vunpack.c.l.b16 %v1511
        %v1736 = vunpack.c.l.b16 %v1512
        %v1737 = vunpack.c.l.b16 %v1513
        %v1738 = vunpack.c.l.b16 %v1514
        %v1739 = vunpack.c.l.b16 %v1515
        %v1740 = vunpack.c.l.b16 %v1516
        %v1741 = vunpack.c.l.b16 %v1517
        %v1742 = vunpack.c.l.b16 %v1518
        %v1743 = vunpack.c.l.b16 %v1519
        %v1744 = vunpack.c.l.b16 %v1520
        %v1745 = vunpack.c.l.b16 %v1521
        %v1746 = vunpack.c.l.b16 %v1522
        %v1747 = vunpack.c.l.b16 %v1523
        %v1748 = vunpack.c.l.b16 %v1524
        %v1749 = vunpack.c.l.b16 %v1525
        %v1750 = vunpack.c.l.b16 %v1526
        %v1751 = vunpack.c.l.b16 %v1527
        %v1752 = vunpack.c.l.b16 %v1528
        %v1753 = vunpack.c.l.b16 %v1529
        %v1754 = vunpack.c.l.b16 %v1530
        %v1755 = vunpack.c.l.b16 %v1531
        %v1756 = vunpack.c.l.b16 %v1532
        %v1757 = vunpack.c.l.b16 %v1533
        %v1758 = vunpack.c.l.b16 %v1534
        %v1759 = vunpack.c.l.b16 %v1535
        %v1760 = vunpack.c.l.b16 %v1536
        %v1761 = vunpack.c.l.b16 %v1537
        %v1762 = vunpack.c.l.b16 %v1538
        %v1763 = vunpack.c.l.b16 %v1539
        %v1764 = vunpack.c.l.b16 %v1540
        %v1765 = vunpack.c.l.b16 %v1541
        %v1766 = vunpack.c.l.b16 %v1542
        %v1767 = vunpack.c.l.b16 %v1543
        %v1768 = vunpack.c.l.b16 %v1544
        %v1769 = vunpack.c.l.b16 %v1545
        %v1770 = vunpack.c.l.b16 %v1546
        %v1771 = vunpack.c.l.b16 %v1547
        %v1772 = vunpack.c.l.b16 %v1548
        %v1773 = vunpack.c.l.b16 %v1549
        %v1774 = vunpack.c.l.b16 %v1550
        %v1775 = vunpack.c.l.b16 %v1551
        %v1776 = vunpack.c.l.b16 %v1552
        %v1777 = vunpack.c.l.b16 %v1553
        %v1778 = vunpack.c.l.b16 %v1554
        %v1779 = vunpack.c.l.b16 %v1555
        %v1780 = vunpack.c.l.b16 %v1556
        %v1781 = vunpack.c.l.b16 %v1557
        %v1782 = vunpack.c.l.b16 %v1558
        %v1783 = vpack.c.b16 %v1672, %v1671
        %v1784 = vpack.c.b16 %v1674, %v1673
        %v1785 = vpack.c.b16 %v1676, %v1675
        %v1786 = vpack.c.b16 %v1678, %v1677
        %v1787 = vpack.c.b16 %v1680, %v1679
        %v1788 = vpack.c.b16 %v1682, %v1681
        %v1789 = vpack.c.b16 %v1684, %v1683
        %v1790 = vpack.c.b16 %v1686, %v1685
        %v1791 = vpack.c.b16 %v1688, %v1687
        %v1792 = vpack.c.b16 %v1690, %v1689
        %v1793 = vpack.c.b16 %v1692, %v1691
        %v1794 = vpack.c.b16 %v1694, %v1693
        %v1795 = vpack.c.b16 %v1696, %v1695
        %v1796 = vpack.c.b16 %v1698, %v1697
        %v1797 = vpack.c.b16 %v1700, %v1699
        %v1798 = vpack.c.b16 %v1702, %v1701
        %v1799 = vpack.c.b16 %v1704, %v1703
        %v1800 = vpack.c.b16 %v1706, %v1705
        %v1801 = vpack.c.b16 %v1708, %v1707
        %v1802 = vpack.c.b16 %v1710, %v1709
        %v1803 = vpack.c.b16 %v1712, %v1711
        %v1804 = vpack.c.b16 %v1714, %v1713
        %v1805 = vpack.c.b16 %v1716, %v1715
        %v1806 = vpack.c.b16 %v1718, %v1717
        %v1807 = vpack.c.b16 %v1720, %v1719
        %v1808 = vpack.c.b16 %v1722, %v1721
        %v1809 = vpack.c.b16 %v1724, %v1723
        %v1810 = vpack.c.b16 %v1726, %v1725
        %v1811 = vpack.c.b16 %v1728, %v1727
        %v1812 = vpack.c.b16 %v1730, %v1729
        %v1813 = vpack.c.b16 %v1732, %v1731
        %v1814 = vpack.c.b16 %v1734, %v1733
        %v1815 = vpack.c.b16 %v1736, %v1735
        %v1816 = vpack.c.b16 %v1738, %v1737
        %v1817 = vpack.c.b16 %v1740, %v1739
        %v1818 = vpack.c.b16 %v1742, %v1741
        %v1819 = vpack.c.b16 %v1744, %v1743
        %v1820 = vpack.c.b16 %v1746, %v1745
        %v1821 = vpack.c.b16 %v1748, %v1747
        %v1822 = vpack.c.b16 %v1750, %v1749
        %v1823 = vpack.c.b16 %v1752, %v1751
        %v1824 = vpack.c.b16 %v1754, %v1753
        %v1825 = vpack.c.b16 %v1756, %v1755
        %v1826 = vpack.c.b16 %v1758, %v1757
        %v1827 = vpack.c.b16 %v1760, %v1759
        %v1828 = vpack.c.b16 %v1762, %v1761
        %v1829 = vpack.c.b16 %v1764, %v1763
        %v1830 = vpack.c.b16 %v1766, %v1765
        %v1831 = vpack.c.b16 %v1768, %v1767
        %v1832 = vpack.c.b16 %v1770, %v1769
        %v1833 = vpack.c.b16 %v1772, %v1771
        %v1834 = vpack.c.b16 %v1774, %v1773
        %v1835 = vpack.c.b16 %v1776, %v1775
        %v1836 = vpack.c.b16 %v1778, %v1777
        %v1837 = vpack.c.b16 %v1780, %v1779
        %v1838 = vpack.c.b16 %v1782, %v1781
        %1895 = vmatprep.subr.bf16.mxu0 0
        %1896 = vmatpush1.bf16.msra.mxu0 %v1783
        %1897 = vmatprep.subr.bf16.mxu0 0
        %1898 = vmatpush1.bf16.msra.mxu0 %v1784
        %1899 = vmatprep.subr.bf16.mxu0 0
        %1900 = vmatpush1.bf16.msra.mxu0 %v1785
        %1901 = vmatprep.subr.bf16.mxu0 0
        %1902 = vmatpush1.bf16.msra.mxu0 %v1786
        %1903 = vmatprep.subr.bf16.mxu0 0
        %1904 = vmatpush1.bf16.msra.mxu0 %v1787
        %1905 = vmatprep.subr.bf16.mxu0 0
        %1906 = vmatpush1.bf16.msra.mxu0 %v1788
        %1907 = vmatprep.subr.bf16.mxu0 0
        %1908 = vmatpush1.bf16.msra.mxu0 %v1789
        %1909 = vmatprep.subr.bf16.mxu0 0
        %1910 = vmatpush1.bf16.msra.mxu0 %v1790
        %1911 = vmatprep.subr.bf16.mxu0 0
        %1912 = vmatpush1.bf16.msra.mxu0 %v1791
        %1913 = vmatprep.subr.bf16.mxu0 0
        %1914 = vmatpush1.bf16.msra.mxu0 %v1792
        %1915 = vmatprep.subr.bf16.mxu0 0
        %1916 = vmatpush1.bf16.msra.mxu0 %v1793
        %1917 = vmatprep.subr.bf16.mxu0 0
        %1918 = vmatpush1.bf16.msra.mxu0 %v1794
        %1919 = vmatprep.subr.bf16.mxu0 0
        %1920 = vmatpush1.bf16.msra.mxu0 %v1795
        %1921 = vmatprep.subr.bf16.mxu0 0
        %1922 = vmatpush1.bf16.msra.mxu0 %v1796
        %1923 = vmatprep.subr.bf16.mxu0 0
        %1924 = vmatpush1.bf16.msra.mxu0 %v1797
        %1925 = vmatprep.subr.bf16.mxu0 0
        %1926 = vmatpush1.bf16.msra.mxu0 %v1798
        %1927 = vmatprep.mubr.bf16.mxu0 %v1437
        %1928 = vmatmul.mubr.bf16.gmra.mrb[0].mxu0 %v1437
        %v1929 = vpop.f32.mrb[0].mxu0
        %v1930 = vadd.f32 %v310, %v1929
        %v1931 = vpop.f32.mrb[0].mxu0
        %v1932 = vpop.f32.mrb[0].mxu0
        %v1933 = vadd.f32 %v311, %v1932
        %v1934 = vpop.f32.mrb[0].mxu0
        %1935 = vmatprep.mubr.bf16.mxu0 %v1439
        %1936 = vmatmul.mubr.bf16.gmra.mrb[0].mxu0 %v1438
        %v1937 = vpop.f32.mrb[0].mxu0
        %v1938 = vadd.f32 %v312, %v1937
        %v1939 = vpop.f32.mrb[0].mxu0
        %v1940 = vpop.f32.mrb[0].mxu0
        %v1941 = vadd.f32 %v313, %v1940
        %v1942 = vpop.f32.mrb[0].mxu0
        %1943 = vmatprep.mubr.bf16.mxu0 %v1441
        %1944 = vmatmul.mubr.bf16.gmra.mrb[0].mxu0 %v1440
        %v1945 = vpop.f32.mrb[0].mxu0
        %v1946 = vadd.f32 %v314, %v1945
        %v1947 = vpop.f32.mrb[0].mxu0
        %v1948 = vpop.f32.mrb[0].mxu0
        %v1949 = vadd.f32 %v315, %v1948
        %v1950 = vpop.f32.mrb[0].mxu0
        %1951 = vmatprep.mubr.bf16.mxu0 %v1443
        %1952 = vmatmul.mubr.bf16.gmra.mrb[0].mxu0 %v1442
        %v1953 = vpop.f32.mrb[0].mxu0
        %v1954 = vadd.f32 %v316, %v1953
        %v1955 = vpop.f32.mrb[0].mxu0
        %v1956 = vpop.f32.mrb[0].mxu0
        %v1957 = vadd.f32 %v317, %v1956
        %v1958 = vpop.f32.mrb[0].mxu0
        %1959 = vdwg.mxu0
        %1960 = vmatprep.subr.bf16.mxu0 0
        %1961 = vmatpush1.bf16.msra.mxu0 %v1799
        %1962 = vmatprep.subr.bf16.mxu0 0
        %1963 = vmatpush1.bf16.msra.mxu0 %v1800
        %1964 = vmatprep.subr.bf16.mxu0 0
        %1965 = vmatpush1.bf16.msra.mxu0 %v1801
        %1966 = vmatprep.subr.bf16.mxu0 0
        %1967 = vmatpush1.bf16.msra.mxu0 %v1802
        %1968 = vmatprep.subr.bf16.mxu0 0
        %1969 = vmatpush1.bf16.msra.mxu0 %v1803
        %1970 = vmatprep.subr.bf16.mxu0 0
        %1971 = vmatpush1.bf16.msra.mxu0 %v1804
        %1972 = vmatprep.subr.bf16.mxu0 0
        %1973 = vmatpush1.bf16.msra.mxu0 %v1805
        %1974 = vmatprep.subr.bf16.mxu0 0
        %1975 = vmatpush1.bf16.msra.mxu0 %v1806
        %1976 = vmatprep.subr.bf16.mxu0 0
        %1977 = vmatpush1.bf16.msra.mxu0 %v1807
        %1978 = vmatprep.subr.bf16.mxu0 0
        %1979 = vmatpush1.bf16.msra.mxu0 %v1808
        %1980 = vmatprep.subr.bf16.mxu0 0
        %1981 = vmatpush1.bf16.msra.mxu0 %v1809
        %1982 = vmatprep.subr.bf16.mxu0 0
        %1983 = vmatpush1.bf16.msra.mxu0 %v1810
        %1984 = vmatprep.subr.bf16.mxu0 0
        %1985 = vmatpush1.bf16.msra.mxu0 %v1811
        %1986 = vmatprep.subr.bf16.mxu0 0
        %1987 = vmatpush1.bf16.msra.mxu0 %v1812
        %1988 = vmatprep.subr.bf16.mxu0 0
        %1989 = vmatpush1.bf16.msra.mxu0 %v1813
        %1990 = vmatprep.subr.bf16.mxu0 0
        %1991 = vmatpush1.bf16.msra.mxu0 %v1814
        %1992 = vmatprep.mubr.bf16.mxu0 %v1439
        %1993 = vmatmul.mubr.bf16.gmra.mrb[0].mxu0 %v1438
        %v1994 = vpop.f32.mrb[0].mxu0
        %v1995 = vadd.f32 %v1930, %v1994
        %v1996 = vpop.f32.mrb[0].mxu0
        %v1997 = vpop.f32.mrb[0].mxu0
        %v1998 = vadd.f32 %v1933, %v1997
        %v1999 = vpop.f32.mrb[0].mxu0
        %2000 = vmatprep.mubr.bf16.mxu0 %v1441
        %2001 = vmatmul.mubr.bf16.gmra.mrb[0].mxu0 %v1440
        %v2002 = vpop.f32.mrb[0].mxu0
        %v2003 = vadd.f32 %v1938, %v2002
        %v2004 = vpop.f32.mrb[0].mxu0
        %v2005 = vpop.f32.mrb[0].mxu0
        %v2006 = vadd.f32 %v1941, %v2005
        %v2007 = vpop.f32.mrb[0].mxu0
        %2008 = vmatprep.mubr.bf16.mxu0 %v1443
        %2009 = vmatmul.mubr.bf16.gmra.mrb[0].mxu0 %v1442
        %v2010 = vpop.f32.mrb[0].mxu0
        %v2011 = vadd.f32 %v1946, %v2010
        %v2012 = vpop.f32.mrb[0].mxu0
        %v2013 = vpop.f32.mrb[0].mxu0
        %v2014 = vadd.f32 %v1949, %v2013
        %v2015 = vpop.f32.mrb[0].mxu0
        %2016 = vmatprep.mubr.bf16.mxu0 %v1445
        %2017 = vmatmul.mubr.bf16.gmra.mrb[0].mxu0 %v1444
        %v2018 = vpop.f32.mrb[0].mxu0
        %v2019 = vadd.f32 %v1954, %v2018
        %v2020 = vpop.f32.mrb[0].mxu0
        %v2021 = vpop.f32.mrb[0].mxu0
        %v2022 = vadd.f32 %v1957, %v2021
        %v2023 = vpop.f32.mrb[0].mxu0
        %2024 = vdwg.mxu0
        %2025 = vmatprep.subr.bf16.mxu0 0
        %2026 = vmatpush1.bf16.msra.mxu0 %v1815
        %2027 = vmatprep.subr.bf16.mxu0 0
        %2028 = vmatpush1.bf16.msra.mxu0 %v1816
        %2029 = vmatprep.subr.bf16.mxu0 0
        %2030 = vmatpush1.bf16.msra.mxu0 %v1817
        %2031 = vmatprep.subr.bf16.mxu0 0
        %2032 = vmatpush1.bf16.msra.mxu0 %v1818
        %2033 = vmatprep.subr.bf16.mxu0 0
        %2034 = vmatpush1.bf16.msra.mxu0 %v1819
        %2035 = vmatprep.subr.bf16.mxu0 0
        %2036 = vmatpush1.bf16.msra.mxu0 %v1820
        %2037 = vmatprep.subr.bf16.mxu0 0
        %2038 = vmatpush1.bf16.msra.mxu0 %v1821
        %2039 = vmatprep.subr.bf16.mxu0 0
        %2040 = vmatpush1.bf16.msra.mxu0 %v1822
        %2041 = vmatprep.subr.bf16.mxu0 0
        %2042 = vmatpush1.bf16.msra.mxu0 %v1823
        %2043 = vmatprep.subr.bf16.mxu0 0
        %2044 = vmatpush1.bf16.msra.mxu0 %v1824
        %2045 = vmatprep.subr.bf16.mxu0 0
        %2046 = vmatpush1.bf16.msra.mxu0 %v1825
        %2047 = vmatprep.subr.bf16.mxu0 0
        %2048 = vmatpush1.bf16.msra.mxu0 %v1826
        %2049 = vmatprep.subr.bf16.mxu0 0
        %2050 = vmatpush1.bf16.msra.mxu0 %v1827
        %2051 = vmatprep.subr.bf16.mxu0 0
        %2052 = vmatpush1.bf16.msra.mxu0 %v1828
        %2053 = vmatprep.subr.bf16.mxu0 0
        %2054 = vmatpush1.bf16.msra.mxu0 %v1829
        %2055 = vmatprep.subr.bf16.mxu0 0
        %2056 = vmatpush1.bf16.msra.mxu0 %v1830
        %2057 = vmatprep.mubr.bf16.mxu0 %v1441
        %2058 = vmatmul.mubr.bf16.gmra.mrb[0].mxu0 %v1440
        %v2059 = vpop.f32.mrb[0].mxu0
        %v2060 = vadd.f32 %v1995, %v2059
        %v2061 = vpop.f32.mrb[0].mxu0
        %v2062 = vpop.f32.mrb[0].mxu0
        %v2063 = vadd.f32 %v1998, %v2062
        %v2064 = vpop.f32.mrb[0].mxu0
        %2065 = vmatprep.mubr.bf16.mxu0 %v1443
        %2066 = vmatmul.mubr.bf16.gmra.mrb[0].mxu0 %v1442
        %v2067 = vpop.f32.mrb[0].mxu0
        %v2068 = vadd.f32 %v2003, %v2067
        %v2069 = vpop.f32.mrb[0].mxu0
        %v2070 = vpop.f32.mrb[0].mxu0
        %v2071 = vadd.f32 %v2006, %v2070
        %v2072 = vpop.f32.mrb[0].mxu0
        %2073 = vmatprep.mubr.bf16.mxu0 %v1445
        %2074 = vmatmul.mubr.bf16.gmra.mrb[0].mxu0 %v1444
        %v2075 = vpop.f32.mrb[0].mxu0
        %v2076 = vadd.f32 %v2011, %v2075
        %v2077 = vpop.f32.mrb[0].mxu0
        %v2078 = vpop.f32.mrb[0].mxu0
        %v2079 = vadd.f32 %v2014, %v2078
        %v2080 = vpop.f32.mrb[0].mxu0
        %2081 = vmatprep.mubr.bf16.mxu0 %v1437
        %2082 = vmatmul.mubr.bf16.gmra.mrb[0].mxu0 %v1446
        %v2083 = vpop.f32.mrb[0].mxu0
        %v2084 = vadd.f32 %v2019, %v2083
        %v2085 = vpop.f32.mrb[0].mxu0
        %v2086 = vpop.f32.mrb[0].mxu0
        %v2087 = vadd.f32 %v2022, %v2086
        %v2088 = vpop.f32.mrb[0].mxu0
        %2089 = vdwg.mxu0
        %2090 = vmatprep.subr.bf16.mxu0 0
        %2091 = vmatpush1.bf16.msra.mxu0 %v1831
        %2092 = vmatprep.subr.bf16.mxu0 0
        %2093 = vmatpush1.bf16.msra.mxu0 %v1832
        %2094 = vmatprep.subr.bf16.mxu0 0
        %2095 = vmatpush1.bf16.msra.mxu0 %v1833
        %2096 = vmatprep.subr.bf16.mxu0 0
        %2097 = vmatpush1.bf16.msra.mxu0 %v1834
        %2098 = vmatprep.subr.bf16.mxu0 0
        %2099 = vmatpush1.bf16.msra.mxu0 %v1835
        %2100 = vmatprep.subr.bf16.mxu0 0
        %2101 = vmatpush1.bf16.msra.mxu0 %v1836
        %2102 = vmatprep.subr.bf16.mxu0 0
        %2103 = vmatpush1.bf16.msra.mxu0 %v1837
        %2104 = vmatprep.subr.bf16.mxu0 0
        %2105 = vmatpush1.bf16.msra.mxu0 %v1838
        %2106 = vmatprep.subr.bf16.mxu0 0
        %2107 = vmatpush1.bf16.msra.mxu0 0
        %2108 = vmatprep.subr.bf16.mxu0 0
        %2109 = vmatpush1.bf16.msra.mxu0 0
        %2110 = vmatprep.subr.bf16.mxu0 0
        %2111 = vmatpush1.bf16.msra.mxu0 0
        %2112 = vmatprep.subr.bf16.mxu0 0
        %2113 = vmatpush1.bf16.msra.mxu0 0
        %2114 = vmatprep.subr.bf16.mxu0 0
        %2115 = vmatpush1.bf16.msra.mxu0 0
        %2116 = vmatprep.subr.bf16.mxu0 0
        %2117 = vmatpush1.bf16.msra.mxu0 0
        %2118 = vmatprep.subr.bf16.mxu0 0
        %2119 = vmatpush1.bf16.msra.mxu0 0
        %2120 = vmatprep.subr.bf16.mxu0 0
        %2121 = vmatpush1.bf16.msra.mxu0 0
        %2122 = vmatprep.mubr.bf16.mxu0 0
        %2123 = vmatmul.mubr.bf16.gmra.mrb[0].mxu0 %v1442
        %v2124 = vpop.f32.mrb[0].mxu0
        %v2125 = vadd.f32 %v2060, %v2124
        %v2126 = vpop.f32.mrb[0].mxu0
        %v2127 = vpop.f32.mrb[0].mxu0
        %v2128 = vadd.f32 %v2063, %v2127
        %v2129 = vpop.f32.mrb[0].mxu0
        %2130 = vmatprep.mubr.bf16.mxu0 0
        %2131 = vmatmul.mubr.bf16.gmra.mrb[0].mxu0 %v1444
        %v2132 = vpop.f32.mrb[0].mxu0
        %v2133 = vadd.f32 %v2068, %v2132
        %v2134 = vpop.f32.mrb[0].mxu0
        %v2135 = vpop.f32.mrb[0].mxu0
        %v2136 = vadd.f32 %v2071, %v2135
        %v2137 = vpop.f32.mrb[0].mxu0
        %2138 = vmatprep.mubr.bf16.mxu0 0
        %2139 = vmatmul.mubr.bf16.gmra.mrb[0].mxu0 %v1446
        %v2140 = vpop.f32.mrb[0].mxu0
        %v2141 = vadd.f32 %v2076, %v2140
        %v2142 = vpop.f32.mrb[0].mxu0
        %v2143 = vpop.f32.mrb[0].mxu0
        %v2144 = vadd.f32 %v2079, %v2143
        %v2145 = vpop.f32.mrb[0].mxu0
        %2146 = vmatprep.mubr.bf16.mxu0 0
        %2147 = vmatmul.mubr.bf16.gmra.mrb[0].mxu0 %v1437
        %v2148 = vpop.f32.mrb[0].mxu0
        %v2149 = vadd.f32 %v2084, %v2148
        %v2150 = vpop.f32.mrb[0].mxu0
        %v2151 = vpop.f32.mrb[0].mxu0
        %v2152 = vadd.f32 %v2087, %v2151
        %v2153 = vpop.f32.mrb[0].mxu0
        %2154 = vdwg.mxu0
        %2155 = vst [vmem:[%s308] sm:$0xff] %v2125
        %2156 = vst [vmem:[%s308 + $0x8] sm:$0xff] %v2128
        %2157 = vst [vmem:[%s308 + $0x10] sm:$0xff] %v2133
        %2158 = vst [vmem:[%s308 + $0x18] sm:$0xff] %v2136
        %2159 = vst [vmem:[%s308 + $0x20] sm:$0xff] %v2141
        %2160 = vst [vmem:[%s308 + $0x28] sm:$0xff] %v2144
        %2161 = vst [vmem:[%s308 + $0x30] sm:$0xff] %v2149
        %2162 = vst [vmem:[%s308 + $0x38] sm:$0xff] %v2152
        %p2163 = scmp.lt.s32.totalorder %s20, 1
        %s2164 = scalar_select %p2163, %s20, 1
        %s2165 = smul.addr %s2164, 8
        %s2166 = smul.addr %s2165, 8
        %s2167 = scalar_lea.vmem %s7, %s2166
        // Predicated region
        $region57: #{layer3_forward.1} parent=47 // pred_check
          %p2168 = pneg %p190
        $region58: #{layer3_forward.1} parent=47 // pred_check_branch
          %2170 = sbr.rel (%p2168) target = $region60
        $region59: #{layer3_forward.1} parent=47 // pred_region
          _
        $region60: #{layer3_forward.1} parent=47 // pred_fallthru
          _
      $region48: #{layer3_forward.1} parent=5 // pred_fallthru
        _
      %p2171 = scmp.le.s32.totalorder 2, %s15
      // Predicated region
      $region61: #{layer3_forward.1} parent=5 // pred_check
        %p2172 = pneg %p2171
      $region62: #{layer3_forward.1} parent=5 // pred_check_branch
        %2174 = sbr.rel (%p2172) target = $region64
      $region63: #{layer3_forward.1} parent=5 // pred_region
        %s2175 = ssub.s32 %s15, 2
        // Predicated region
        $region65: #{layer3_forward.1} parent=63 // pred_check
          %p2176 = pneg %p196
        $region66: #{layer3_forward.1} parent=63 // pred_check_branch
          %2178 = sbr.rel (%p2176) target = $region68
        $region67: #{layer3_forward.1} parent=63 // pred_region
          %p2179 = scmp.lt.s32.totalorder %s21, 1
          %s2180 = scalar_select %p2179, %s21, 1
          %s2181 = smul.addr %s2180, 8
          %s2182 = smul.addr %s2181, 8
          %s2183 = scalar_lea.vmem %s7, %s2182
        $region68: #{layer3_forward.1} parent=63 // pred_fallthru
          _
      $region64: #{layer3_forward.1} parent=5 // pred_fallthru
        _
    $region6: #{layer3_forward.1} parent=1 // loop_footer
      %s19 = sadd.s32 1, %s15
    $region7: #{layer3_forward.1} parent=1 // loop_footer_branch
      %14 = sbr.rel target = $region3
    $region8: #{layer3_forward.1} parent=1 // loop_exit
      _
    %2184 = vsyncpa [#allocation3], 1
    %s2185 = scalar_lea.sflag [#allocation3], 1
    %2186 = vsyncpa %s2185, 1
    %2187 = vsyncpa [#allocation5], 1

</llo_original>
